<compile_context>
chip_gen: v6e
topology: v6e:2x2x1
jax: 0.10.0
libtpu: 0.0.40
codegen_flags: <defaults>
</compile_context>

<pallas_src>
import jax
import jax.numpy as jnp
from jax.experimental import pallas as pl
from jax.experimental.pallas import tpu as pltpu


def _silu(v):
    return v * jax.nn.sigmoid(v)


def _round_up(v, m):
    return (v + m - 1) // m * m


# -----------------------------------------------------------------------------
# Kernel
# -----------------------------------------------------------------------------
def mpnn_kernel(xs_ref, xr_ref, dist_ref, rec_ref, x_ref,
                w1s_ref, w1r_ref, w1d_ref, b1_ref, w2_ref, b2_ref,
                u1x_ref, u1a_ref, c1_ref, u2_ref, c2_ref,
                out_ref, aggr_ref):
    e = pl.program_id(0)

    @pl.when(e == 0)
    def _init():
        aggr_ref[...] = jnp.zeros_like(aggr_ref)

    xs = xs_ref[...]            # [TE, Hp] bf16   x[send] tile
    xr = xr_ref[...]            # [TE, Hp] bf16   x[rec]  tile
    dist = dist_ref[...]        # [TE, 1]  f32    ||pos[send]-pos[rec]||

    # ----- message MLP (concat expressed as split-weight matmul sum) -----
    h1 = (jnp.dot(xs, w1s_ref[...], preferred_element_type=jnp.float32)
          + jnp.dot(xr, w1r_ref[...], preferred_element_type=jnp.float32)
          + dist * w1d_ref[...]            # [TE,1]*[1,Hp] broadcast, f32
          + b1_ref[...])
    h1 = _silu(h1)                                          # f32 [TE, Hp]
    msg = jnp.dot(h1.astype(jnp.bfloat16), w2_ref[...],
                  preferred_element_type=jnp.float32) + b2_ref[...]
    msg = _silu(msg)                                        # f32 [TE, Hp]

    # ----- scatter_add(message, rec): per-tile one-hot matmul on the MXU -----
    # one-hot is only [N, TE] (bounded by the edge tile), accumulated into the
    # resident f32 scratch. Padded edges have rec == -1 -> all-zero column.
    n_nodes = aggr_ref.shape[0]
    te = xs.shape[0]
    node_ids = jax.lax.broadcasted_iota(jnp.int32, (n_nodes, te), 0)
    onehot = (node_ids == rec_ref[...]).astype(jnp.bfloat16)     # [N, TE]
    aggr_ref[...] += jnp.dot(onehot, msg.astype(jnp.bfloat16),
                             preferred_element_type=jnp.float32)

    # ----- update MLP + store, once, after the last edge tile -----
    @pl.when(e == pl.num_programs(0) - 1)
    def _finalize():
        g1 = (jnp.dot(x_ref[...], u1x_ref[...],
                      preferred_element_type=jnp.float32)
              + jnp.dot(aggr_ref[...].astype(jnp.bfloat16), u1a_ref[...],
                        preferred_element_type=jnp.float32)
              + c1_ref[...])
        g1 = _silu(g1)
        out = jnp.dot(g1.astype(jnp.bfloat16), u2_ref[...],
                      preferred_element_type=jnp.float32) + c2_ref[...]
        out_ref[...] = out.astype(out_ref.dtype)


# -----------------------------------------------------------------------------
# Wrapper
# -----------------------------------------------------------------------------
def mpnn_layer_forward(x, pos, edge_index, params, *, edge_tile=512):
    """Fused MPNNLayer forward (reduced=False, include_dist=True)."""
    n_nodes, h = x.shape
    e_cnt = edge_index.shape[1]
    bf = jnp.bfloat16

    # Lane-dense hidden width, sublane-friendly node count, 128-aligned tiles.
    hp = _round_up(max(h, 128), 128)
    np_ = _round_up(max(n_nodes, 8), 8)
    te = _round_up(min(edge_tile, _round_up(e_cnt, 128)), 128)
    ep = _round_up(e_cnt, te)
    n_eblocks = ep // te

    send = edge_index[0]
    rec = edge_index[1].astype(jnp.int32)

    # dist in the wrapper -> ps/pr never enter the kernel (3-lane tiles avoided)
    dist = jnp.sqrt(jnp.sum((pos[send] - pos[rec]) ** 2, axis=1,
                            keepdims=True)).astype(jnp.float32)

    # Gathered, bf16, padded edge features. Padded edges: zero features,
    # receiver = -1 (never matches any node id in the kernel one-hot).
    pad_e = ep - e_cnt
    xs_p = jnp.pad(x[send].astype(bf), ((0, pad_e), (0, hp - h)))
    xr_p = jnp.pad(x[rec].astype(bf), ((0, pad_e), (0, hp - h)))
    dist_p = jnp.pad(dist, ((0, pad_e), (0, 0)))
    rec_p = jnp.pad(rec, (0, pad_e), constant_values=-1).reshape(1, ep)

    x_p = jnp.pad(x.astype(bf), ((0, np_ - n_nodes), (0, hp - h)))

    def pad_w(w):  # matmul weights -> bf16, zero-padded to [Hp, Hp]
        return jnp.pad(w.astype(bf),
                       ((0, hp - w.shape[0]), (0, hp - w.shape[1])))

    def pad_b(b):  # biases / dist row stay f32, zero-padded to [1, Hp]
        return jnp.pad(b.astype(jnp.float32), ((0, 0), (0, hp - b.shape[1])))

    w1s, w1r, w2 = pad_w(params["w1s"]), pad_w(params["w1r"]), pad_w(params["w2"])
    u1x, u1a, u2 = pad_w(params["u1x"]), pad_w(params["u1a"]), pad_w(params["u2"])
    w1d, b1, b2 = pad_b(params["w1d"]), pad_b(params["b1"]), pad_b(params["b2"])
    c1, c2 = pad_b(params["c1"]), pad_b(params["c2"])

    def full_spec(shape):
        nd = len(shape)
        return pl.BlockSpec(shape, lambda e, nd=nd: (0,) * nd)

    in_specs = [
        pl.BlockSpec((te, hp), lambda e: (e, 0)),   # xs   (edge-streamed)
        pl.BlockSpec((te, hp), lambda e: (e, 0)),   # xr   (edge-streamed)
        pl.BlockSpec((te, 1), lambda e: (e, 0)),    # dist (edge-streamed)
        pl.BlockSpec((1, te), lambda e: (0, e)),    # rec  (edge-streamed)
        full_spec(x_p.shape),                       # x    (resident)
        full_spec(w1s.shape), full_spec(w1r.shape), full_spec(w1d.shape),
        full_spec(b1.shape), full_spec(w2.shape), full_spec(b2.shape),
        full_spec(u1x.shape), full_spec(u1a.shape), full_spec(c1.shape),
        full_spec(u2.shape), full_spec(c2.shape),
    ]

    # Generation-aware VMEM limit (v5e/v6e: 128 MiB, v7x: 64 MiB physical).
    try:
        vmem_cap = pltpu.get_tpu_info().vmem_capacity_bytes
    except Exception:
        vmem_cap = 64 * 1024 * 1024
    vmem_limit = int(min(vmem_cap * 3 // 4, 100 * 1024 * 1024))

    out_padded = pl.pallas_call(
        mpnn_kernel,
        out_shape=jax.ShapeDtypeStruct((np_, hp), jnp.float32),
        grid=(n_eblocks,),
        in_specs=in_specs,
        out_specs=pl.BlockSpec((np_, hp), lambda e: (0, 0)),
        scratch_shapes=[pltpu.VMEM((np_, hp), jnp.float32)],   # aggr accumulator
        compiler_params=pltpu.CompilerParams(
            dimension_semantics=("arbitrary",),
            vmem_limit_bytes=vmem_limit),
    )(xs_p, xr_p, dist_p, rec_p, x_p,
      w1s, w1r, w1d, b1, w2, b2, u1x, u1a, c1, u2, c2)

    return out_padded[:n_nodes, :h]


# -----------------------------------------------------------------------------
# Parameters & references
# -----------------------------------------------------------------------------
def init_params(key, num_hidden, pos_dim=3):
    """Deterministic parameter init. Weights stored as [in, out]."""
    ks = jax.random.split(key, 10)
    s = 0.1

    def w(k, shape):
        return (s * jax.random.normal(k, shape)).astype(jnp.float32)

    return {
        # message_mlp: Linear(2H+1 -> H), SiLU, Linear(H -> H), SiLU
        # first layer split into [x_send | x_rec | dist] blocks.
        "w1s": w(ks[0], (num_hidden, num_hidden)),
        "w1r": w(ks[1], (num_hidden, num_hidden)),
        "w1d": w(ks[2], (1, num_hidden)),
        "b1": w(ks[3], (1, num_hidden)),
        "w2": w(ks[4], (num_hidden, num_hidden)),
        "b2": w(ks[5], (1, num_hidden)),
        # update_mlp: Linear(2H -> H), SiLU, Linear(H -> H)
        # first layer split into [x | aggr] blocks.
        "u1x": w(ks[6], (num_hidden, num_hidden)),
        "u1a": w(ks[7], (num_hidden, num_hidden)),
        "c1": w(ks[8], (1, num_hidden)),
        "u2": w(ks[9], (num_hidden, num_hidden)),
        "c2": jnp.zeros((1, num_hidden), jnp.float32),
    }


def reference_forward(x, pos, edge_index, params):
    """Pure-JAX f32 reference mirroring the PyTorch module semantics."""
    send, rec = edge_index[0], edge_index[1]
    n_nodes, num_hidden = x.shape

    state = jnp.concatenate([x[send], x[rec]], axis=1)
    dist = jnp.linalg.norm(pos[send] - pos[rec], axis=1)[:, None]
    state = jnp.concatenate([state, dist], axis=1)

    w1 = jnp.concatenate([params["w1s"], params["w1r"], params["w1d"]], axis=0)
    h = jax.nn.silu(state @ w1 + params["b1"])
    msg = jax.nn.silu(h @ params["w2"] + params["b2"])

    aggr = jnp.zeros((n_nodes, num_hidden), jnp.float32).at[rec].add(msg)

    u1 = jnp.concatenate([params["u1x"], params["u1a"]], axis=0)
    g = jax.nn.silu(jnp.concatenate([x, aggr], axis=1) @ u1 + params["c1"])
    return g @ params["u2"] + params["c2"]


def reference_forward_bf16(x, pos, edge_index, params):
    """Reference that mirrors the kernel's bf16-operand / f32-accumulate numerics."""
    bf = jnp.bfloat16
    send, rec = edge_index[0], edge_index[1]
    n_nodes, num_hidden = x.shape

    xs, xr = x[send].astype(bf), x[rec].astype(bf)
    dist = jnp.linalg.norm(pos[send] - pos[rec], axis=1)[:, None]

    h1 = (jnp.dot(xs, params["w1s"].astype(bf), preferred_element_type=jnp.float32)
          + jnp.dot(xr, params["w1r"].astype(bf), preferred_element_type=jnp.float32)
          + dist * params["w1d"] + params["b1"])
    h1 = _silu(h1)
    msg = _silu(jnp.dot(h1.astype(bf), params["w2"].astype(bf),
                        preferred_element_type=jnp.float32) + params["b2"])
    msg_q = msg.astype(bf).astype(jnp.float32)      # kernel scatters bf16 messages
    aggr = jnp.zeros((n_nodes, num_hidden), jnp.float32).at[rec].add(msg_q)

    g1 = (jnp.dot(x.astype(bf), params["u1x"].astype(bf),
                  preferred_element_type=jnp.float32)
          + jnp.dot(aggr.astype(bf), params["u1a"].astype(bf),
                    preferred_element_type=jnp.float32)
          + params["c1"])
    g1 = _silu(g1)
    return jnp.dot(g1.astype(bf), params["u2"].astype(bf),
                   preferred_element_type=jnp.float32) + params["c2"]


# -----------------------------------------------------------------------------
# Test
# -----------------------------------------------------------------------------
if __name__ == "__main__":
    key = jax.random.PRNGKey(0)
    k_x, k_pos, k_edge, k_par = jax.random.split(key, 4)

    num_nodes = 64
    num_edges = 300          # -> padded to 384 = 3 edge tiles of 128
    num_hidden = 32          # -> padded to 128 lanes inside the wrapper
    pos_dim = 3

    x = jax.random.normal(k_x, (num_nodes, num_hidden), jnp.float32)
    pos = jax.random.normal(k_pos, (num_nodes, pos_dim), jnp.float32)
    edge_index = jax.random.randint(
        k_edge, (2, num_edges), 0, num_nodes, dtype=jnp.int32)

    params = init_params(k_par, num_hidden, pos_dim)

    out = mpnn_layer_forward(x, pos, edge_index, params, edge_tile=128)
    out = jax.block_until_ready(out)
    assert out.shape == (num_nodes, num_hidden)

    # Tight check against a reference that matches the kernel's bf16-operand /
    # f32-accumulate numerics.
    ref_bf16 = reference_forward_bf16(x, pos, edge_index, params)
    assert jnp.allclose(out, ref_bf16, rtol=2e-3, atol=2e-3), \
        "mismatch vs bf16-matched reference"

    # Looser sanity check against the all-f32 PyTorch-semantics reference
    # (gap is the expected bf16 matmul-operand quantization).
    ref_f32 = reference_forward(x, pos, edge_index, params)
    assert jnp.allclose(out, ref_f32, rtol=5e-2, atol=5e-2), \
        "mismatch vs f32 reference"

    print("KERNEL_OK")
</pallas_src>

<mosaic_0001>
module attributes {stable_mosaic.version = 11 : i64} {
  func.func @mpnn_kernel(%arg0: i32, %arg1: memref<128x128xbf16, #tpu.memory_space<vmem>>, %arg2: memref<128x128xbf16, #tpu.memory_space<vmem>>, %arg3: memref<128x1xf32, #tpu.memory_space<vmem>>, %arg4: memref<1x128xi32, #tpu.memory_space<vmem>>, %arg5: memref<64x128xbf16, #tpu.memory_space<vmem>>, %arg6: memref<128x128xbf16, #tpu.memory_space<vmem>>, %arg7: memref<128x128xbf16, #tpu.memory_space<vmem>>, %arg8: memref<1x128xf32, #tpu.memory_space<vmem>>, %arg9: memref<1x128xf32, #tpu.memory_space<vmem>>, %arg10: memref<128x128xbf16, #tpu.memory_space<vmem>>, %arg11: memref<1x128xf32, #tpu.memory_space<vmem>>, %arg12: memref<128x128xbf16, #tpu.memory_space<vmem>>, %arg13: memref<128x128xbf16, #tpu.memory_space<vmem>>, %arg14: memref<1x128xf32, #tpu.memory_space<vmem>>, %arg15: memref<128x128xbf16, #tpu.memory_space<vmem>>, %arg16: memref<1x128xf32, #tpu.memory_space<vmem>>, %arg17: memref<64x128xf32, #tpu.memory_space<vmem>>, %arg18: memref<64x128xf32, #tpu.memory_space<vmem>>) attributes {dimension_semantics = [#tpu.dimension_semantics<arbitrary>], iteration_bounds = array<i64: 3>, scalar_prefetch = 0 : i64, scratch_operands = 1 : i64, tpu.core_type = #tpu.core_type<tc>, window_params = [{transform_indices = @transform_0, window_bounds = array<i64: 128, 128>}, {transform_indices = @transform_1, window_bounds = array<i64: 128, 128>}, {transform_indices = @transform_2, window_bounds = array<i64: 128, 1>}, {transform_indices = @transform_3, window_bounds = array<i64: 1, 128>}, {pipeline_mode = #tpu.pipeline_mode<synchronous>, transform_indices = @transform_4, window_bounds = array<i64: 64, 128>}, {pipeline_mode = #tpu.pipeline_mode<synchronous>, transform_indices = @transform_5, window_bounds = array<i64: 128, 128>}, {pipeline_mode = #tpu.pipeline_mode<synchronous>, transform_indices = @transform_6, window_bounds = array<i64: 128, 128>}, {pipeline_mode = #tpu.pipeline_mode<synchronous>, transform_indices = @transform_7, window_bounds = array<i64: 1, 128>}, {pipeline_mode = #tpu.pipeline_mode<synchronous>, transform_indices = @transform_8, window_bounds = array<i64: 1, 128>}, {pipeline_mode = #tpu.pipeline_mode<synchronous>, transform_indices = @transform_9, window_bounds = array<i64: 128, 128>}, {pipeline_mode = #tpu.pipeline_mode<synchronous>, transform_indices = @transform_10, window_bounds = array<i64: 1, 128>}, {pipeline_mode = #tpu.pipeline_mode<synchronous>, transform_indices = @transform_11, window_bounds = array<i64: 128, 128>}, {pipeline_mode = #tpu.pipeline_mode<synchronous>, transform_indices = @transform_12, window_bounds = array<i64: 128, 128>}, {pipeline_mode = #tpu.pipeline_mode<synchronous>, transform_indices = @transform_13, window_bounds = array<i64: 1, 128>}, {pipeline_mode = #tpu.pipeline_mode<synchronous>, transform_indices = @transform_14, window_bounds = array<i64: 128, 128>}, {pipeline_mode = #tpu.pipeline_mode<synchronous>, transform_indices = @transform_15, window_bounds = array<i64: 1, 128>}, {pipeline_mode = #tpu.pipeline_mode<synchronous>, transform_indices = @transform_16, window_bounds = array<i64: 64, 128>}]} {
    %c0_i32 = arith.constant 0 : i32
    %0 = arith.cmpi eq, %arg0, %c0_i32 : i32
    %1 = arith.extui %0 : i1 to i32
    %c0_i32_0 = arith.constant 0 : i32
    %2 = arith.cmpi ne, %1, %c0_i32_0 : i32
    scf.if %2 {
      %cst_30 = arith.constant 0.000000e+00 : f32
      %52 = vector.broadcast %cst_30 : f32 to vector<64x128xf32>
      %c0_31 = arith.constant 0 : index
      %c0_32 = arith.constant 0 : index
      %53 = vector.load %arg18[%c0_31, %c0_32] : memref<64x128xf32, #tpu.memory_space<vmem>>, vector<64x128xf32>
      tpu.vector_store %arg18[%c0_31, %c0_32], %52 {strides = array<i32>} : memref<64x128xf32, #tpu.memory_space<vmem>>, vector<64x128xf32>,
    } else {
    }
    %c0 = arith.constant 0 : index
    %c0_1 = arith.constant 0 : index
    %3 = vector.load %arg1[%c0, %c0_1] : memref<128x128xbf16, #tpu.memory_space<vmem>>, vector<128x128xbf16>
    %c0_2 = arith.constant 0 : index
    %c0_3 = arith.constant 0 : index
    %4 = vector.load %arg2[%c0_2, %c0_3] : memref<128x128xbf16, #tpu.memory_space<vmem>>, vector<128x128xbf16>
    %c0_4 = arith.constant 0 : index
    %c0_5 = arith.constant 0 : index
    %5 = vector.load %arg3[%c0_4, %c0_5] : memref<128x1xf32, #tpu.memory_space<vmem>>, vector<128x1xf32>
    %c0_6 = arith.constant 0 : index
    %c0_7 = arith.constant 0 : index
    %6 = vector.load %arg6[%c0_6, %c0_7] : memref<128x128xbf16, #tpu.memory_space<vmem>>, vector<128x128xbf16>
    %cst = arith.constant dense<0.000000e+00> : vector<128x128xf32>
    %7 = tpu.matmul %3, %6, %cst {dimension_numbers = #tpu.dot_dimension_numbers<[1], [0], [0], [1], [0, 0, 1, 1], [], []>} : vector<128x128xbf16>, vector<128x128xbf16>, vector<128x128xf32> -> vector<128x128xf32>
    %c0_8 = arith.constant 0 : index
    %c0_9 = arith.constant 0 : index
    %8 = vector.load %arg7[%c0_8, %c0_9] : memref<128x128xbf16, #tpu.memory_space<vmem>>, vector<128x128xbf16>
    %cst_10 = arith.constant dense<0.000000e+00> : vector<128x128xf32>
    %9 = tpu.matmul %4, %8, %cst_10 {dimension_numbers = #tpu.dot_dimension_numbers<[1], [0], [0], [1], [0, 0, 1, 1], [], []>} : vector<128x128xbf16>, vector<128x128xbf16>, vector<128x128xf32> -> vector<128x128xf32>
    %10 = arith.addf %7, %9 : vector<128x128xf32>
    %c0_11 = arith.constant 0 : index
    %c0_12 = arith.constant 0 : index
    %11 = vector.load %arg8[%c0_11, %c0_12] : memref<1x128xf32, #tpu.memory_space<vmem>>, vector<1x128xf32>
    %12 = vector.broadcast %5 : vector<128x1xf32> to vector<128x128xf32>
    %13 = vector.broadcast %11 : vector<1x128xf32> to vector<128x128xf32>
    %14 = arith.mulf %12, %13 : vector<128x128xf32>
    %15 = arith.addf %10, %14 : vector<128x128xf32>
    %c0_13 = arith.constant 0 : index
    %c0_14 = arith.constant 0 : index
    %16 = vector.load %arg9[%c0_13, %c0_14] : memref<1x128xf32, #tpu.memory_space<vmem>>, vector<1x128xf32>
    %17 = vector.broadcast %16 : vector<1x128xf32> to vector<128x128xf32>
    %18 = arith.addf %15, %17 : vector<128x128xf32>
    %19 = arith.negf %18 : vector<128x128xf32>
    %20 = math.exp %19 : vector<128x128xf32>
    %cst_15 = arith.constant 1.000000e+00 : f32
    %21 = vector.broadcast %cst_15 : f32 to vector<128x128xf32>
    %22 = arith.addf %21, %20 : vector<128x128xf32>
    %23 = arith.divf %21, %22 : vector<128x128xf32>
    %24 = arith.mulf %18, %23 : vector<128x128xf32>
    %25 = arith.truncf %24 : vector<128x128xf32> to vector<128x128xbf16>
    %c0_16 = arith.constant 0 : index
    %c0_17 = arith.constant 0 : index
    %26 = vector.load %arg10[%c0_16, %c0_17] : memref<128x128xbf16, #tpu.memory_space<vmem>>, vector<128x128xbf16>
    %cst_18 = arith.constant dense<0.000000e+00> : vector<128x128xf32>
    %27 = tpu.matmul %25, %26, %cst_18 {dimension_numbers = #tpu.dot_dimension_numbers<[1], [0], [0], [1], [0, 0, 1, 1], [], []>} : vector<128x128xbf16>, vector<128x128xbf16>, vector<128x128xf32> -> vector<128x128xf32>
    %c0_19 = arith.constant 0 : index
    %c0_20 = arith.constant 0 : index
    %28 = vector.load %arg11[%c0_19, %c0_20] : memref<1x128xf32, #tpu.memory_space<vmem>>, vector<1x128xf32>
    %29 = vector.broadcast %28 : vector<1x128xf32> to vector<128x128xf32>
    %30 = arith.addf %27, %29 : vector<128x128xf32>
    %31 = arith.negf %30 : vector<128x128xf32>
    %32 = math.exp %31 : vector<128x128xf32>
    %cst_21 = arith.constant 1.000000e+00 : f32
    %33 = vector.broadcast %cst_21 : f32 to vector<128x128xf32>
    %34 = arith.addf %33, %32 : vector<128x128xf32>
    %35 = arith.divf %33, %34 : vector<128x128xf32>
    %36 = arith.mulf %30, %35 : vector<128x128xf32>
    %37 = tpu.iota {dimensions = array<i32: 0>} : vector<64x128xi32>
    %c0_22 = arith.constant 0 : index
    %c0_23 = arith.constant 0 : index
    %38 = vector.load %arg4[%c0_22, %c0_23] : memref<1x128xi32, #tpu.memory_space<vmem>>, vector<1x128xi32>
    %39 = vector.broadcast %38 : vector<1x128xi32> to vector<64x128xi32>
    %40 = arith.cmpi eq, %37, %39 : vector<64x128xi32>
    %41 = arith.extui %40 : vector<64x128xi1> to vector<64x128xi32>
    %42 = arith.sitofp %41 : vector<64x128xi32> to vector<64x128xf32>
    %43 = arith.truncf %42 : vector<64x128xf32> to vector<64x128xbf16>
    %c0_24 = arith.constant 0 : index
    %c0_25 = arith.constant 0 : index
    %44 = vector.load %arg18[%c0_24, %c0_25] : memref<64x128xf32, #tpu.memory_space<vmem>>, vector<64x128xf32>
    %45 = arith.truncf %36 : vector<128x128xf32> to vector<128x128xbf16>
    %cst_26 = arith.constant dense<0.000000e+00> : vector<64x128xf32>
    %46 = tpu.matmul %43, %45, %cst_26 {dimension_numbers = #tpu.dot_dimension_numbers<[1], [0], [0], [1], [0, 0, 1, 1], [], []>} : vector<64x128xbf16>, vector<128x128xbf16>, vector<64x128xf32> -> vector<64x128xf32>
    %47 = arith.addf %44, %46 : vector<64x128xf32>
    %c0_27 = arith.constant 0 : index
    %c0_28 = arith.constant 0 : index
    %48 = vector.load %arg18[%c0_27, %c0_28] : memref<64x128xf32, #tpu.memory_space<vmem>>, vector<64x128xf32>
    tpu.vector_store %arg18[%c0_27, %c0_28], %47 {strides = array<i32>} : memref<64x128xf32, #tpu.memory_space<vmem>>, vector<64x128xf32>,
    %c2_i32 = arith.constant 2 : i32
    %49 = arith.cmpi eq, %arg0, %c2_i32 : i32
    %50 = arith.extui %49 : i1 to i32
    %c0_i32_29 = arith.constant 0 : i32
    %51 = arith.cmpi ne, %50, %c0_i32_29 : i32
    scf.if %51 {
      %c0_30 = arith.constant 0 : index
      %c0_31 = arith.constant 0 : index
      %52 = vector.load %arg5[%c0_30, %c0_31] : memref<64x128xbf16, #tpu.memory_space<vmem>>, vector<64x128xbf16>
      %c0_32 = arith.constant 0 : index
      %c0_33 = arith.constant 0 : index
      %53 = vector.load %arg12[%c0_32, %c0_33] : memref<128x128xbf16, #tpu.memory_space<vmem>>, vector<128x128xbf16>
      %cst_34 = arith.constant dense<0.000000e+00> : vector<64x128xf32>
      %54 = tpu.matmul %52, %53, %cst_34 {dimension_numbers = #tpu.dot_dimension_numbers<[1], [0], [0], [1], [0, 0, 1, 1], [], []>} : vector<64x128xbf16>, vector<128x128xbf16>, vector<64x128xf32> -> vector<64x128xf32>
      %c0_35 = arith.constant 0 : index
      %c0_36 = arith.constant 0 : index
      %55 = vector.load %arg18[%c0_35, %c0_36] : memref<64x128xf32, #tpu.memory_space<vmem>>, vector<64x128xf32>
      %56 = arith.truncf %55 : vector<64x128xf32> to vector<64x128xbf16>
      %c0_37 = arith.constant 0 : index
      %c0_38 = arith.constant 0 : index
      %57 = vector.load %arg13[%c0_37, %c0_38] : memref<128x128xbf16, #tpu.memory_space<vmem>>, vector<128x128xbf16>
      %cst_39 = arith.constant dense<0.000000e+00> : vector<64x128xf32>
      %58 = tpu.matmul %56, %57, %cst_39 {dimension_numbers = #tpu.dot_dimension_numbers<[1], [0], [0], [1], [0, 0, 1, 1], [], []>} : vector<64x128xbf16>, vector<128x128xbf16>, vector<64x128xf32> -> vector<64x128xf32>
      %59 = arith.addf %54, %58 : vector<64x128xf32>
      %c0_40 = arith.constant 0 : index
      %c0_41 = arith.constant 0 : index
      %60 = vector.load %arg14[%c0_40, %c0_41] : memref<1x128xf32, #tpu.memory_space<vmem>>, vector<1x128xf32>
      %61 = vector.broadcast %60 : vector<1x128xf32> to vector<64x128xf32>
      %62 = arith.addf %59, %61 : vector<64x128xf32>
      %63 = arith.negf %62 : vector<64x128xf32>
      %64 = math.exp %63 : vector<64x128xf32>
      %cst_42 = arith.constant 1.000000e+00 : f32
      %65 = vector.broadcast %cst_42 : f32 to vector<64x128xf32>
      %66 = arith.addf %65, %64 : vector<64x128xf32>
      %67 = arith.divf %65, %66 : vector<64x128xf32>
      %68 = arith.mulf %62, %67 : vector<64x128xf32>
      %69 = arith.truncf %68 : vector<64x128xf32> to vector<64x128xbf16>
      %c0_43 = arith.constant 0 : index
      %c0_44 = arith.constant 0 : index
      %70 = vector.load %arg15[%c0_43, %c0_44] : memref<128x128xbf16, #tpu.memory_space<vmem>>, vector<128x128xbf16>
      %cst_45 = arith.constant dense<0.000000e+00> : vector<64x128xf32>
      %71 = tpu.matmul %69, %70, %cst_45 {dimension_numbers = #tpu.dot_dimension_numbers<[1], [0], [0], [1], [0, 0, 1, 1], [], []>} : vector<64x128xbf16>, vector<128x128xbf16>, vector<64x128xf32> -> vector<64x128xf32>
      %c0_46 = arith.constant 0 : index
      %c0_47 = arith.constant 0 : index
      %72 = vector.load %arg16[%c0_46, %c0_47] : memref<1x128xf32, #tpu.memory_space<vmem>>, vector<1x128xf32>
      %73 = vector.broadcast %72 : vector<1x128xf32> to vector<64x128xf32>
      %74 = arith.addf %71, %73 : vector<64x128xf32>
      %c0_48 = arith.constant 0 : index
      %c0_49 = arith.constant 0 : index
      %75 = vector.load %arg17[%c0_48, %c0_49] : memref<64x128xf32, #tpu.memory_space<vmem>>, vector<64x128xf32>
      tpu.vector_store %arg17[%c0_48, %c0_49], %74 {strides = array<i32>} : memref<64x128xf32, #tpu.memory_space<vmem>>, vector<64x128xf32>,
    } else {
    }
    return
  }
  func.func @transform_0(%arg0: i32) -> (i32, i32) {
    %c0_i32 = arith.constant 0 : i32
    %c0_i32_0 = arith.constant 0 : i32
    return %arg0, %c0_i32 : i32, i32
  }
  func.func @transform_1(%arg0: i32) -> (i32, i32) {
    %c0_i32 = arith.constant 0 : i32
    %c0_i32_0 = arith.constant 0 : i32
    return %arg0, %c0_i32 : i32, i32
  }
  func.func @transform_2(%arg0: i32) -> (i32, i32) {
    %c0_i32 = arith.constant 0 : i32
    %c0_i32_0 = arith.constant 0 : i32
    return %arg0, %c0_i32 : i32, i32
  }
  func.func @transform_3(%arg0: i32) -> (i32, i32) {
    %c0_i32 = arith.constant 0 : i32
    %c0_i32_0 = arith.constant 0 : i32
    return %c0_i32, %arg0 : i32, i32
  }
  func.func @transform_4(%arg0: i32) -> (i32, i32) {
    %c0_i32 = arith.constant 0 : i32
    %c0_i32_0 = arith.constant 0 : i32
    %c0_i32_1 = arith.constant 0 : i32
    return %c0_i32, %c0_i32_0 : i32, i32
  }
  func.func @transform_5(%arg0: i32) -> (i32, i32) {
    %c0_i32 = arith.constant 0 : i32
    %c0_i32_0 = arith.constant 0 : i32
    %c0_i32_1 = arith.constant 0 : i32
    return %c0_i32, %c0_i32_0 : i32, i32
  }
  func.func @transform_6(%arg0: i32) -> (i32, i32) {
    %c0_i32 = arith.constant 0 : i32
    %c0_i32_0 = arith.constant 0 : i32
    %c0_i32_1 = arith.constant 0 : i32
    return %c0_i32, %c0_i32_0 : i32, i32
  }
  func.func @transform_7(%arg0: i32) -> (i32, i32) {
    %c0_i32 = arith.constant 0 : i32
    %c0_i32_0 = arith.constant 0 : i32
    %c0_i32_1 = arith.constant 0 : i32
    return %c0_i32, %c0_i32_0 : i32, i32
  }
  func.func @transform_8(%arg0: i32) -> (i32, i32) {
    %c0_i32 = arith.constant 0 : i32
    %c0_i32_0 = arith.constant 0 : i32
    %c0_i32_1 = arith.constant 0 : i32
    return %c0_i32, %c0_i32_0 : i32, i32
  }
  func.func @transform_9(%arg0: i32) -> (i32, i32) {
    %c0_i32 = arith.constant 0 : i32
    %c0_i32_0 = arith.constant 0 : i32
    %c0_i32_1 = arith.constant 0 : i32
    return %c0_i32, %c0_i32_0 : i32, i32
  }
  func.func @transform_10(%arg0: i32) -> (i32, i32) {
    %c0_i32 = arith.constant 0 : i32
    %c0_i32_0 = arith.constant 0 : i32
    %c0_i32_1 = arith.constant 0 : i32
    return %c0_i32, %c0_i32_0 : i32, i32
  }
  func.func @transform_11(%arg0: i32) -> (i32, i32) {
    %c0_i32 = arith.constant 0 : i32
    %c0_i32_0 = arith.constant 0 : i32
    %c0_i32_1 = arith.constant 0 : i32
    return %c0_i32, %c0_i32_0 : i32, i32
  }
  func.func @transform_12(%arg0: i32) -> (i32, i32) {
    %c0_i32 = arith.constant 0 : i32
    %c0_i32_0 = arith.constant 0 : i32
    %c0_i32_1 = arith.constant 0 : i32
    return %c0_i32, %c0_i32_0 : i32, i32
  }
  func.func @transform_13(%arg0: i32) -> (i32, i32) {
    %c0_i32 = arith.constant 0 : i32
    %c0_i32_0 = arith.constant 0 : i32
    %c0_i32_1 = arith.constant 0 : i32
    return %c0_i32, %c0_i32_0 : i32, i32
  }
  func.func @transform_14(%arg0: i32) -> (i32, i32) {
    %c0_i32 = arith.constant 0 : i32
    %c0_i32_0 = arith.constant 0 : i32
    %c0_i32_1 = arith.constant 0 : i32
    return %c0_i32, %c0_i32_0 : i32, i32
  }
  func.func @transform_15(%arg0: i32) -> (i32, i32) {
    %c0_i32 = arith.constant 0 : i32
    %c0_i32_0 = arith.constant 0 : i32
    %c0_i32_1 = arith.constant 0 : i32
    return %c0_i32, %c0_i32_0 : i32, i32
  }
  func.func @transform_16(%arg0: i32) -> (i32, i32) {
    %c0_i32 = arith.constant 0 : i32
    %c0_i32_0 = arith.constant 0 : i32
    %c0_i32_1 = arith.constant 0 : i32
    return %c0_i32, %c0_i32_0 : i32, i32
  }
}

</mosaic_0001>

<llo_original>
// kernel: tpu_custom_call.1
$region0: #{tpu_custom_call.1}
  #allocation0 [shape = 'u32[]', space=smem, size = 0x4, offset = 0x4, fixed_abs, tag = 'smem constant byte address 0x4 - core index']
  #allocation1 [shape = 'u32[144,128]{1,0:T(1,128)}', space=vmem, size = 0x12000, scoped, tag = 'internal scratch']
  #allocation2 [shape = 'f32[64,128]{1,0:T(8,128)}', space=vmem, size = 0x8000, scoped, tag = 'scratch operand']
  %s0 = inlined_call_operand.vmem [shape: bf16[384,128], index: 0, kind: input, shape index: {}]
  %s1 = inlined_call_operand.vmem [shape: bf16[384,128], index: 1, kind: input, shape index: {}]
  %s2 = inlined_call_operand.vmem [shape: f32[384,1], index: 2, kind: input, shape index: {}]
  %s3 = inlined_call_operand.vmem [shape: s32[1,384], index: 3, kind: input, shape index: {}]
  %s4 = inlined_call_operand.hbm [shape: bf16[64,128], index: 4, kind: input, shape index: {}]
  %s5 = inlined_call_operand.hbm [shape: bf16[128,128], index: 5, kind: input, shape index: {}]
  %s6 = inlined_call_operand.hbm [shape: bf16[128,128], index: 6, kind: input, shape index: {}]
  %s7 = inlined_call_operand.vmem [shape: f32[1,128], index: 7, kind: input, shape index: {}]
  %s8 = inlined_call_operand.vmem [shape: f32[1,128], index: 8, kind: input, shape index: {}]
  %s9 = inlined_call_operand.hbm [shape: bf16[128,128], index: 9, kind: input, shape index: {}]
  %s10 = inlined_call_operand.vmem [shape: f32[1,128], index: 10, kind: input, shape index: {}]
  %s11 = inlined_call_operand.hbm [shape: bf16[128,128], index: 11, kind: input, shape index: {}]
  %s12 = inlined_call_operand.hbm [shape: bf16[128,128], index: 12, kind: input, shape index: {}]
  %s13 = inlined_call_operand.vmem [shape: f32[1,128], index: 13, kind: input, shape index: {}]
  %s14 = inlined_call_operand.hbm [shape: bf16[128,128], index: 14, kind: input, shape index: {}]
  %s15 = inlined_call_operand.vmem [shape: f32[1,128], index: 15, kind: input, shape index: {}]
  %s16 = inlined_call_operand.hbm [shape: f32[64,128], index: 16, kind: output, shape index: {}]
  %s17 = sld [smem:[#allocation0]]
  $region133: #{tpu_custom_call.1} parent=0
    _
  %s19 = ssub.s32 1, %s17
  %s20 = scalar_select 0, %s19, %s17
  $region1: #{tpu_custom_call.1} parent=0
    #allocation3 [shape = 'u8[16384]{0}', space=vmem, size = 0x4000, scoped, tag = 'input window, operand 4, single buffered']
    #allocation4 [shape = 's32[2]{0}', space=sflag, size = 0x8, scoped, tag = 'scoped memory for tpu_custom_call.1']
    #allocation5 [shape = 's32[2]{0}', space=sflag, size = 0x8, scoped, tag = 'scoped memory for tpu_custom_call.1']
    #allocation6 [shape = 'u8[32768]{0}', space=vmem, size = 0x8000, scoped, tag = 'input window, operand 5, single buffered']
    #allocation7 [shape = 's32[1]{0}', space=sflag, size = 0x4, scoped, tag = 'scoped memory for tpu_custom_call.1']
    #allocation8 [shape = 'u8[32768]{0}', space=vmem, size = 0x8000, scoped, tag = 'input window, operand 6, single buffered']
    #allocation9 [shape = 'u8[32768]{0}', space=vmem, size = 0x8000, scoped, tag = 'input window, operand 9, single buffered']
    #allocation10 [shape = 's32[1]{0}', space=sflag, size = 0x4, scoped, tag = 'scoped memory for tpu_custom_call.1']
    #allocation11 [shape = 'u8[32768]{0}', space=vmem, size = 0x8000, scoped, tag = 'input window, operand 11, single buffered']
    #allocation12 [shape = 'u8[32768]{0}', space=vmem, size = 0x8000, scoped, tag = 'input window, operand 12, single buffered']
    #allocation13 [shape = 's32[1]{0}', space=sflag, size = 0x4, scoped, tag = 'scoped memory for tpu_custom_call.1']
    #allocation14 [shape = 'u8[32768]{0}', space=vmem, size = 0x8000, scoped, tag = 'input window, operand 14, single buffered']
    #allocation15 [shape = 'u8[32768]{0}', space=vmem, size = 0x8000, scoped, tag = 'output window, operand 0, single buffered']
    %21 = vsyncpa [#allocation4], 0
    %22 = vsyncpa [#allocation7], 0
    %23 = vsyncpa [#allocation10], 0
    %24 = vsyncpa [#allocation13], 0
    %25 = vsyncpa [#allocation5], 0
    loop: start=0, step=1, limit=5
    $region2: #{tpu_custom_call.1} parent=1 // loop_pre_header
      _
    $region3: #{tpu_custom_call.1} parent=1 // loop_header
      %s27 = sphi 0, %s31
      %p28 = scmp.ge.s32.totalorder %s27, 5
      %s37 = sphi 0, %s39
      %s40 = sphi 0, %s37
      %s41 = sphi 0, %s40
      %s57 = sphi 0, %s41
      %s63 = sphi 0, %s65
      %s66 = sphi 0, %s63
      %s67 = sphi 0, %s66
      %s83 = sphi 0, %s67
      %s89 = sphi 0, %s91
      %s92 = sphi 0, %s89
      %s93 = sphi 0, %s92
      %s109 = sphi 0, %s93
      %s115 = sphi 0, %s117
      %s118 = sphi 0, %s115
      %s119 = sphi 0, %s118
      %s135 = sphi 0, %s119
      %s139 = sphi 0, %s139
      %s141 = sphi 0, %s139
      %s142 = sphi 0, %s141
      %s156 = sphi 0, %s142
      %s160 = sphi 0, %s160
      %s162 = sphi 0, %s160
      %s163 = sphi 0, %s162
      %s177 = sphi 0, %s163
      %s181 = sphi 0, %s181
      %s183 = sphi 0, %s181
      %s184 = sphi 0, %s183
      %s198 = sphi 0, %s184
      %s202 = sphi 0, %s202
      %s204 = sphi 0, %s202
      %s205 = sphi 0, %s204
      %s219 = sphi 0, %s205
      %s223 = sphi 0, %s223
      %s225 = sphi 0, %s223
      %s226 = sphi 0, %s225
      %s240 = sphi 0, %s226
      %s244 = sphi 0, %s244
      %s246 = sphi 0, %s244
      %s247 = sphi 0, %s246
      %s261 = sphi 0, %s247
      %s265 = sphi 0, %s265
      %s267 = sphi 0, %s265
      %s268 = sphi 0, %s267
      %s282 = sphi 0, %s268
      %s286 = sphi 0, %s286
      %s288 = sphi 0, %s286
      %s289 = sphi 0, %s288
      %s303 = sphi 0, %s289
      %s307 = sphi 0, %s307
      %s309 = sphi 0, %s307
      %s310 = sphi 0, %s309
      %s324 = sphi 0, %s310
      %s328 = sphi 0, %s328
      %s330 = sphi 0, %s328
      %s331 = sphi 0, %s330
      %s345 = sphi 0, %s331
      %s349 = sphi 0, %s349
      %s351 = sphi 0, %s349
      %s352 = sphi 0, %s351
      %s366 = sphi 0, %s352
      %s370 = sphi 0, %s370
      %s372 = sphi 0, %s370
      %s373 = sphi 0, %s372
      %s387 = sphi 0, %s373
      %s391 = sphi 0, %s391
      %s393 = sphi 0, %s391
      %s394 = sphi 0, %s393
      %s408 = sphi 0, %s394
    $region4: #{tpu_custom_call.1} parent=1 // loop_header_branch
      %30 = sbr.rel (%p28) target = $region8
    $region5: #{tpu_custom_call.1} parent=1 // loop_body
      %s32 = ssub.s32 %s27, 1
      %s33 = ssub.s32 %s27, 2
      %s34 = sadd.s32 %s27, 1
      %s35 = ssub.s32 %s27, %s34
      %p36 = scmp.eq.s32.totalorder %s35, 0
      %s38 = sadd.s32 %s37, 1
      %s39 = scalar_select %p36, %s37, %s38
      %p42 = pneg %p36
      %p43 = scmp.eq.s32.totalorder %s27, 2
      %p44 = por %p42, %p43
      %p45 = scmp.ne.s32.totalorder %s37, %s40
      %p46 = scmp.eq.s32.totalorder %s27, 0
      %p47 = por %p45, %p46
      %p48 = scmp.ne.s32.totalorder %s37, %s40
      %p49 = scmp.eq.s32.totalorder %s32, 2
      %p50 = por %p48, %p49
      %p51 = scmp.ne.s32.totalorder %s40, %s41
      %p52 = scmp.eq.s32.totalorder %s32, 0
      %p53 = por %p51, %p52
      %p54 = scmp.ne.s32.totalorder %s40, %s41
      %p55 = scmp.eq.s32.totalorder %s33, 2
      %p56 = por %p54, %p55
      %p58 = scmp.ne.s32.totalorder %s41, %s57
      %p59 = scmp.eq.s32.totalorder %s33, 0
      %p60 = por %p58, %p59
      %s61 = ssub.s32 %s27, %s34
      %p62 = scmp.eq.s32.totalorder %s61, 0
      %s64 = sadd.s32 %s63, 1
      %s65 = scalar_select %p62, %s63, %s64
      %p68 = pneg %p62
      %p69 = scmp.eq.s32.totalorder %s27, 2
      %p70 = por %p68, %p69
      %p71 = scmp.ne.s32.totalorder %s63, %s66
      %p72 = scmp.eq.s32.totalorder %s27, 0
      %p73 = por %p71, %p72
      %p74 = scmp.ne.s32.totalorder %s63, %s66
      %p75 = scmp.eq.s32.totalorder %s32, 2
      %p76 = por %p74, %p75
      %p77 = scmp.ne.s32.totalorder %s66, %s67
      %p78 = scmp.eq.s32.totalorder %s32, 0
      %p79 = por %p77, %p78
      %p80 = scmp.ne.s32.totalorder %s66, %s67
      %p81 = scmp.eq.s32.totalorder %s33, 2
      %p82 = por %p80, %p81
      %p84 = scmp.ne.s32.totalorder %s67, %s83
      %p85 = scmp.eq.s32.totalorder %s33, 0
      %p86 = por %p84, %p85
      %s87 = ssub.s32 %s27, %s34
      %p88 = scmp.eq.s32.totalorder %s87, 0
      %s90 = sadd.s32 %s89, 1
      %s91 = scalar_select %p88, %s89, %s90
      %p94 = pneg %p88
      %p95 = scmp.eq.s32.totalorder %s27, 2
      %p96 = por %p94, %p95
      %p97 = scmp.ne.s32.totalorder %s89, %s92
      %p98 = scmp.eq.s32.totalorder %s27, 0
      %p99 = por %p97, %p98
      %p100 = scmp.ne.s32.totalorder %s89, %s92
      %p101 = scmp.eq.s32.totalorder %s32, 2
      %p102 = por %p100, %p101
      %p103 = scmp.ne.s32.totalorder %s92, %s93
      %p104 = scmp.eq.s32.totalorder %s32, 0
      %p105 = por %p103, %p104
      %p106 = scmp.ne.s32.totalorder %s92, %s93
      %p107 = scmp.eq.s32.totalorder %s33, 2
      %p108 = por %p106, %p107
      %p110 = scmp.ne.s32.totalorder %s93, %s109
      %p111 = scmp.eq.s32.totalorder %s33, 0
      %p112 = por %p110, %p111
      %s113 = ssub.s32 %s27, %s34
      %p114 = scmp.eq.s32.totalorder %s113, 0
      %s116 = sadd.s32 %s115, 1
      %s117 = scalar_select %p114, %s115, %s116
      %p120 = pneg %p114
      %p121 = scmp.eq.s32.totalorder %s27, 2
      %p122 = por %p120, %p121
      %p123 = scmp.ne.s32.totalorder %s115, %s118
      %p124 = scmp.eq.s32.totalorder %s27, 0
      %p125 = por %p123, %p124
      %p126 = scmp.ne.s32.totalorder %s115, %s118
      %p127 = scmp.eq.s32.totalorder %s32, 2
      %p128 = por %p126, %p127
      %p129 = scmp.ne.s32.totalorder %s118, %s119
      %p130 = scmp.eq.s32.totalorder %s32, 0
      %p131 = por %p129, %p130
      %p132 = scmp.ne.s32.totalorder %s118, %s119
      %p133 = scmp.eq.s32.totalorder %s33, 2
      %p134 = por %p132, %p133
      %p136 = scmp.ne.s32.totalorder %s119, %s135
      %p137 = scmp.eq.s32.totalorder %s33, 0
      %p138 = por %p136, %p137
      %s140 = sadd.s32 %s139, 1
      %p143 = scmp.eq.s32.totalorder %s27, 2
      %p144 = scmp.ne.s32.totalorder %s139, %s141
      %p145 = scmp.eq.s32.totalorder %s27, 0
      %p146 = por %p144, %p145
      %p147 = scmp.ne.s32.totalorder %s139, %s141
      %p148 = scmp.eq.s32.totalorder %s32, 2
      %p149 = por %p147, %p148
      %p150 = scmp.ne.s32.totalorder %s141, %s142
      %p151 = scmp.eq.s32.totalorder %s32, 0
      %p152 = por %p150, %p151
      %p153 = scmp.ne.s32.totalorder %s141, %s142
      %p154 = scmp.eq.s32.totalorder %s33, 2
      %p155 = por %p153, %p154
      %p157 = scmp.ne.s32.totalorder %s142, %s156
      %p158 = scmp.eq.s32.totalorder %s33, 0
      %p159 = por %p157, %p158
      %s161 = sadd.s32 %s160, 1
      %p164 = scmp.eq.s32.totalorder %s27, 2
      %p165 = scmp.ne.s32.totalorder %s160, %s162
      %p166 = scmp.eq.s32.totalorder %s27, 0
      %p167 = por %p165, %p166
      %p168 = scmp.ne.s32.totalorder %s160, %s162
      %p169 = scmp.eq.s32.totalorder %s32, 2
      %p170 = por %p168, %p169
      %p171 = scmp.ne.s32.totalorder %s162, %s163
      %p172 = scmp.eq.s32.totalorder %s32, 0
      %p173 = por %p171, %p172
      %p174 = scmp.ne.s32.totalorder %s162, %s163
      %p175 = scmp.eq.s32.totalorder %s33, 2
      %p176 = por %p174, %p175
      %p178 = scmp.ne.s32.totalorder %s163, %s177
      %p179 = scmp.eq.s32.totalorder %s33, 0
      %p180 = por %p178, %p179
      %s182 = sadd.s32 %s181, 1
      %p185 = scmp.eq.s32.totalorder %s27, 2
      %p186 = scmp.ne.s32.totalorder %s181, %s183
      %p187 = scmp.eq.s32.totalorder %s27, 0
      %p188 = por %p186, %p187
      %p189 = scmp.ne.s32.totalorder %s181, %s183
      %p190 = scmp.eq.s32.totalorder %s32, 2
      %p191 = por %p189, %p190
      %p192 = scmp.ne.s32.totalorder %s183, %s184
      %p193 = scmp.eq.s32.totalorder %s32, 0
      %p194 = por %p192, %p193
      %p195 = scmp.ne.s32.totalorder %s183, %s184
      %p196 = scmp.eq.s32.totalorder %s33, 2
      %p197 = por %p195, %p196
      %p199 = scmp.ne.s32.totalorder %s184, %s198
      %p200 = scmp.eq.s32.totalorder %s33, 0
      %p201 = por %p199, %p200
      %s203 = sadd.s32 %s202, 1
      %p206 = scmp.eq.s32.totalorder %s27, 2
      %p207 = scmp.ne.s32.totalorder %s202, %s204
      %p208 = scmp.eq.s32.totalorder %s27, 0
      %p209 = por %p207, %p208
      %p210 = scmp.ne.s32.totalorder %s202, %s204
      %p211 = scmp.eq.s32.totalorder %s32, 2
      %p212 = por %p210, %p211
      %p213 = scmp.ne.s32.totalorder %s204, %s205
      %p214 = scmp.eq.s32.totalorder %s32, 0
      %p215 = por %p213, %p214
      %p216 = scmp.ne.s32.totalorder %s204, %s205
      %p217 = scmp.eq.s32.totalorder %s33, 2
      %p218 = por %p216, %p217
      %p220 = scmp.ne.s32.totalorder %s205, %s219
      %p221 = scmp.eq.s32.totalorder %s33, 0
      %p222 = por %p220, %p221
      %s224 = sadd.s32 %s223, 1
      %p227 = scmp.eq.s32.totalorder %s27, 2
      %p228 = scmp.ne.s32.totalorder %s223, %s225
      %p229 = scmp.eq.s32.totalorder %s27, 0
      %p230 = por %p228, %p229
      %p231 = scmp.ne.s32.totalorder %s223, %s225
      %p232 = scmp.eq.s32.totalorder %s32, 2
      %p233 = por %p231, %p232
      %p234 = scmp.ne.s32.totalorder %s225, %s226
      %p235 = scmp.eq.s32.totalorder %s32, 0
      %p236 = por %p234, %p235
      %p237 = scmp.ne.s32.totalorder %s225, %s226
      %p238 = scmp.eq.s32.totalorder %s33, 2
      %p239 = por %p237, %p238
      %p241 = scmp.ne.s32.totalorder %s226, %s240
      %p242 = scmp.eq.s32.totalorder %s33, 0
      %p243 = por %p241, %p242
      %s245 = sadd.s32 %s244, 1
      %p248 = scmp.eq.s32.totalorder %s27, 2
      %p249 = scmp.ne.s32.totalorder %s244, %s246
      %p250 = scmp.eq.s32.totalorder %s27, 0
      %p251 = por %p249, %p250
      %p252 = scmp.ne.s32.totalorder %s244, %s246
      %p253 = scmp.eq.s32.totalorder %s32, 2
      %p254 = por %p252, %p253
      %p255 = scmp.ne.s32.totalorder %s246, %s247
      %p256 = scmp.eq.s32.totalorder %s32, 0
      %p257 = por %p255, %p256
      %p258 = scmp.ne.s32.totalorder %s246, %s247
      %p259 = scmp.eq.s32.totalorder %s33, 2
      %p260 = por %p258, %p259
      %p262 = scmp.ne.s32.totalorder %s247, %s261
      %p263 = scmp.eq.s32.totalorder %s33, 0
      %p264 = por %p262, %p263
      %s266 = sadd.s32 %s265, 1
      %p269 = scmp.eq.s32.totalorder %s27, 2
      %p270 = scmp.ne.s32.totalorder %s265, %s267
      %p271 = scmp.eq.s32.totalorder %s27, 0
      %p272 = por %p270, %p271
      %p273 = scmp.ne.s32.totalorder %s265, %s267
      %p274 = scmp.eq.s32.totalorder %s32, 2
      %p275 = por %p273, %p274
      %p276 = scmp.ne.s32.totalorder %s267, %s268
      %p277 = scmp.eq.s32.totalorder %s32, 0
      %p278 = por %p276, %p277
      %p279 = scmp.ne.s32.totalorder %s267, %s268
      %p280 = scmp.eq.s32.totalorder %s33, 2
      %p281 = por %p279, %p280
      %p283 = scmp.ne.s32.totalorder %s268, %s282
      %p284 = scmp.eq.s32.totalorder %s33, 0
      %p285 = por %p283, %p284
      %s287 = sadd.s32 %s286, 1
      %p290 = scmp.eq.s32.totalorder %s27, 2
      %p291 = scmp.ne.s32.totalorder %s286, %s288
      %p292 = scmp.eq.s32.totalorder %s27, 0
      %p293 = por %p291, %p292
      %p294 = scmp.ne.s32.totalorder %s286, %s288
      %p295 = scmp.eq.s32.totalorder %s32, 2
      %p296 = por %p294, %p295
      %p297 = scmp.ne.s32.totalorder %s288, %s289
      %p298 = scmp.eq.s32.totalorder %s32, 0
      %p299 = por %p297, %p298
      %p300 = scmp.ne.s32.totalorder %s288, %s289
      %p301 = scmp.eq.s32.totalorder %s33, 2
      %p302 = por %p300, %p301
      %p304 = scmp.ne.s32.totalorder %s289, %s303
      %p305 = scmp.eq.s32.totalorder %s33, 0
      %p306 = por %p304, %p305
      %s308 = sadd.s32 %s307, 1
      %p311 = scmp.eq.s32.totalorder %s27, 2
      %p312 = scmp.ne.s32.totalorder %s307, %s309
      %p313 = scmp.eq.s32.totalorder %s27, 0
      %p314 = por %p312, %p313
      %p315 = scmp.ne.s32.totalorder %s307, %s309
      %p316 = scmp.eq.s32.totalorder %s32, 2
      %p317 = por %p315, %p316
      %p318 = scmp.ne.s32.totalorder %s309, %s310
      %p319 = scmp.eq.s32.totalorder %s32, 0
      %p320 = por %p318, %p319
      %p321 = scmp.ne.s32.totalorder %s309, %s310
      %p322 = scmp.eq.s32.totalorder %s33, 2
      %p323 = por %p321, %p322
      %p325 = scmp.ne.s32.totalorder %s310, %s324
      %p326 = scmp.eq.s32.totalorder %s33, 0
      %p327 = por %p325, %p326
      %s329 = sadd.s32 %s328, 1
      %p332 = scmp.eq.s32.totalorder %s27, 2
      %p333 = scmp.ne.s32.totalorder %s328, %s330
      %p334 = scmp.eq.s32.totalorder %s27, 0
      %p335 = por %p333, %p334
      %p336 = scmp.ne.s32.totalorder %s328, %s330
      %p337 = scmp.eq.s32.totalorder %s32, 2
      %p338 = por %p336, %p337
      %p339 = scmp.ne.s32.totalorder %s330, %s331
      %p340 = scmp.eq.s32.totalorder %s32, 0
      %p341 = por %p339, %p340
      %p342 = scmp.ne.s32.totalorder %s330, %s331
      %p343 = scmp.eq.s32.totalorder %s33, 2
      %p344 = por %p342, %p343
      %p346 = scmp.ne.s32.totalorder %s331, %s345
      %p347 = scmp.eq.s32.totalorder %s33, 0
      %p348 = por %p346, %p347
      %s350 = sadd.s32 %s349, 1
      %p353 = scmp.eq.s32.totalorder %s27, 2
      %p354 = scmp.ne.s32.totalorder %s349, %s351
      %p355 = scmp.eq.s32.totalorder %s27, 0
      %p356 = por %p354, %p355
      %p357 = scmp.ne.s32.totalorder %s349, %s351
      %p358 = scmp.eq.s32.totalorder %s32, 2
      %p359 = por %p357, %p358
      %p360 = scmp.ne.s32.totalorder %s351, %s352
      %p361 = scmp.eq.s32.totalorder %s32, 0
      %p362 = por %p360, %p361
      %p363 = scmp.ne.s32.totalorder %s351, %s352
      %p364 = scmp.eq.s32.totalorder %s33, 2
      %p365 = por %p363, %p364
      %p367 = scmp.ne.s32.totalorder %s352, %s366
      %p368 = scmp.eq.s32.totalorder %s33, 0
      %p369 = por %p367, %p368
      %s371 = sadd.s32 %s370, 1
      %p374 = scmp.eq.s32.totalorder %s27, 2
      %p375 = scmp.ne.s32.totalorder %s370, %s372
      %p376 = scmp.eq.s32.totalorder %s27, 0
      %p377 = por %p375, %p376
      %p378 = scmp.ne.s32.totalorder %s370, %s372
      %p379 = scmp.eq.s32.totalorder %s32, 2
      %p380 = por %p378, %p379
      %p381 = scmp.ne.s32.totalorder %s372, %s373
      %p382 = scmp.eq.s32.totalorder %s32, 0
      %p383 = por %p381, %p382
      %p384 = scmp.ne.s32.totalorder %s372, %s373
      %p385 = scmp.eq.s32.totalorder %s33, 2
      %p386 = por %p384, %p385
      %p388 = scmp.ne.s32.totalorder %s373, %s387
      %p389 = scmp.eq.s32.totalorder %s33, 0
      %p390 = por %p388, %p389
      %s392 = sadd.s32 %s391, 1
      %p395 = scmp.eq.s32.totalorder %s27, 2
      %p396 = scmp.ne.s32.totalorder %s391, %s393
      %p397 = scmp.eq.s32.totalorder %s27, 0
      %p398 = por %p396, %p397
      %p399 = scmp.ne.s32.totalorder %s391, %s393
      %p400 = scmp.eq.s32.totalorder %s32, 2
      %p401 = por %p399, %p400
      %p402 = scmp.ne.s32.totalorder %s393, %s394
      %p403 = scmp.eq.s32.totalorder %s32, 0
      %p404 = por %p402, %p403
      %p405 = scmp.ne.s32.totalorder %s393, %s394
      %p406 = scmp.eq.s32.totalorder %s33, 2
      %p407 = por %p405, %p406
      %p409 = scmp.ne.s32.totalorder %s394, %s408
      %p410 = scmp.eq.s32.totalorder %s33, 0
      %p411 = por %p409, %p410
      %p412 = scmp.le.s32.totalorder 1, %s27
      %p413 = scmp.lt.s32.totalorder %s27, 4
      %p414 = pnand %p412, %p413
      %p415 = pneg %p414
      // Predicated region
      $region9: #{tpu_custom_call.1} parent=5 // pred_check
        _
      $region10: #{tpu_custom_call.1} parent=5 // pred_check_branch
        %417 = sbr.rel (%p414) target = $region12
      $region11: #{tpu_custom_call.1} parent=5 // pred_region
        %s418 = ssub.s32 %s27, 1
        // Predicated region
        $region13: #{tpu_custom_call.1} parent=11 // pred_check
          %p419 = pneg %p152
        $region14: #{tpu_custom_call.1} parent=11 // pred_check_branch
          %421 = sbr.rel (%p419) target = $region16
        $region15: #{tpu_custom_call.1} parent=11 // pred_region
          %s423 = ssub.s32 512, 512
          %424 = vsyncadd [#allocation4], %s423
          %s425 = sshll.u32 [#allocation3], 4
          %s426 = int_to_ptr.vmem [resolvable:$true] %s425
          %431 = dma.hbm_to_vmem [thread:$0]  %s4, 512, %s426, [#allocation4], 64, 64, 4
        $region16: #{tpu_custom_call.1} parent=11 // pred_fallthru
          _
        // Predicated region
        $region17: #{tpu_custom_call.1} parent=11 // pred_check
          %p432 = pneg %p173
        $region18: #{tpu_custom_call.1} parent=11 // pred_check_branch
          %434 = sbr.rel (%p432) target = $region20
        $region19: #{tpu_custom_call.1} parent=11 // pred_region
          %s436 = ssub.s32 1024, 1024
          %437 = vsyncadd [#allocation7], %s436
          %s438 = sshll.u32 [#allocation6], 4
          %s439 = int_to_ptr.vmem [resolvable:$true] %s438
          %444 = dma.hbm_to_vmem [thread:$0]  %s5, 1024, %s439, [#allocation7], 64, 64, 4
        $region20: #{tpu_custom_call.1} parent=11 // pred_fallthru
          _
        // Predicated region
        $region21: #{tpu_custom_call.1} parent=11 // pred_check
          %p445 = pneg %p194
        $region22: #{tpu_custom_call.1} parent=11 // pred_check_branch
          %447 = sbr.rel (%p445) target = $region24
        $region23: #{tpu_custom_call.1} parent=11 // pred_region
          %s449 = ssub.s32 1024, 1024
          %450 = vsyncadd [#allocation7], %s449
          %s451 = sshll.u32 [#allocation8], 4
          %s452 = int_to_ptr.vmem [resolvable:$true] %s451
          %457 = dma.hbm_to_vmem [thread:$0]  %s6, 1024, %s452, [#allocation7], 64, 64, 4
        $region24: #{tpu_custom_call.1} parent=11 // pred_fallthru
          _
        // Predicated region
        $region25: #{tpu_custom_call.1} parent=11 // pred_check
          %p458 = pneg %p215
        $region26: #{tpu_custom_call.1} parent=11 // pred_check_branch
          %460 = sbr.rel (%p458) target = $region28
        $region27: #{tpu_custom_call.1} parent=11 // pred_region
          _
        $region28: #{tpu_custom_call.1} parent=11 // pred_fallthru
          _
        // Predicated region
        $region29: #{tpu_custom_call.1} parent=11 // pred_check
          %p461 = pneg %p236
        $region30: #{tpu_custom_call.1} parent=11 // pred_check_branch
          %463 = sbr.rel (%p461) target = $region32
        $region31: #{tpu_custom_call.1} parent=11 // pred_region
          _
        $region32: #{tpu_custom_call.1} parent=11 // pred_fallthru
          _
        // Predicated region
        $region33: #{tpu_custom_call.1} parent=11 // pred_check
          %p464 = pneg %p257
        $region34: #{tpu_custom_call.1} parent=11 // pred_check_branch
          %466 = sbr.rel (%p464) target = $region36
        $region35: #{tpu_custom_call.1} parent=11 // pred_region
          %s468 = ssub.s32 1024, 1024
          %469 = vsyncadd [#allocation10], %s468
          %s470 = sshll.u32 [#allocation9], 4
          %s471 = int_to_ptr.vmem [resolvable:$true] %s470
          %476 = dma.hbm_to_vmem [thread:$0]  %s9, 1024, %s471, [#allocation10], 64, 64, 4
        $region36: #{tpu_custom_call.1} parent=11 // pred_fallthru
          _
        // Predicated region
        $region37: #{tpu_custom_call.1} parent=11 // pred_check
          %p477 = pneg %p278
        $region38: #{tpu_custom_call.1} parent=11 // pred_check_branch
          %479 = sbr.rel (%p477) target = $region40
        $region39: #{tpu_custom_call.1} parent=11 // pred_region
          _
        $region40: #{tpu_custom_call.1} parent=11 // pred_fallthru
          _
        // Predicated region
        $region41: #{tpu_custom_call.1} parent=11 // pred_check
          %p480 = pneg %p299
        $region42: #{tpu_custom_call.1} parent=11 // pred_check_branch
          %482 = sbr.rel (%p480) target = $region44
        $region43: #{tpu_custom_call.1} parent=11 // pred_region
          %s484 = ssub.s32 1024, 1024
          %485 = vsyncadd [#allocation10], %s484
          %s486 = sshll.u32 [#allocation11], 4
          %s487 = int_to_ptr.vmem [resolvable:$true] %s486
          %492 = dma.hbm_to_vmem [thread:$0]  %s11, 1024, %s487, [#allocation10], 64, 64, 4
        $region44: #{tpu_custom_call.1} parent=11 // pred_fallthru
          _
        // Predicated region
        $region45: #{tpu_custom_call.1} parent=11 // pred_check
          %p493 = pneg %p320
        $region46: #{tpu_custom_call.1} parent=11 // pred_check_branch
          %495 = sbr.rel (%p493) target = $region48
        $region47: #{tpu_custom_call.1} parent=11 // pred_region
          %s497 = ssub.s32 1024, 1024
          %498 = vsyncadd [#allocation13], %s497
          %s499 = sshll.u32 [#allocation12], 4
          %s500 = int_to_ptr.vmem [resolvable:$true] %s499
          %505 = dma.hbm_to_vmem [thread:$0]  %s12, 1024, %s500, [#allocation13], 64, 64, 4
        $region48: #{tpu_custom_call.1} parent=11 // pred_fallthru
          _
        // Predicated region
        $region49: #{tpu_custom_call.1} parent=11 // pred_check
          %p506 = pneg %p341
        $region50: #{tpu_custom_call.1} parent=11 // pred_check_branch
          %508 = sbr.rel (%p506) target = $region52
        $region51: #{tpu_custom_call.1} parent=11 // pred_region
          _
        $region52: #{tpu_custom_call.1} parent=11 // pred_fallthru
          _
        // Predicated region
        $region53: #{tpu_custom_call.1} parent=11 // pred_check
          %p509 = pneg %p362
        $region54: #{tpu_custom_call.1} parent=11 // pred_check_branch
          %511 = sbr.rel (%p509) target = $region56
        $region55: #{tpu_custom_call.1} parent=11 // pred_region
          %s513 = ssub.s32 1024, 1024
          %514 = vsyncadd [#allocation13], %s513
          %s515 = sshll.u32 [#allocation14], 4
          %s516 = int_to_ptr.vmem [resolvable:$true] %s515
          %521 = dma.hbm_to_vmem [thread:$0]  %s14, 1024, %s516, [#allocation13], 64, 64, 4
        $region56: #{tpu_custom_call.1} parent=11 // pred_fallthru
          _
        // Predicated region
        $region57: #{tpu_custom_call.1} parent=11 // pred_check
          %p522 = pneg %p383
        $region58: #{tpu_custom_call.1} parent=11 // pred_check_branch
          %524 = sbr.rel (%p522) target = $region60
        $region59: #{tpu_custom_call.1} parent=11 // pred_region
          _
        $region60: #{tpu_custom_call.1} parent=11 // pred_fallthru
          _
      $region12: #{tpu_custom_call.1} parent=5 // pred_fallthru
        _
      %p525 = scmp.lt.s32.totalorder %s27, 3
      // Predicated region
      $region61: #{tpu_custom_call.1} parent=5 // pred_check
        %p526 = pneg %p525
      $region62: #{tpu_custom_call.1} parent=5 // pred_check_branch
        %528 = sbr.rel (%p526) target = $region64
      $region63: #{tpu_custom_call.1} parent=5 // pred_region
        // Predicated region
        $region65: #{tpu_custom_call.1} parent=63 // pred_check
          %p529 = pneg %p47
        $region66: #{tpu_custom_call.1} parent=63 // pred_check_branch
          %531 = sbr.rel (%p529) target = $region68
        $region67: #{tpu_custom_call.1} parent=63 // pred_region
          %s532 = smul.u32 16, %s27
          %p533 = scmp.lt.s32.totalorder %s532, 47
          %s534 = scalar_select %p533, %s532, 47
          %s535 = smul.addr %s534, 4
          %s536 = scalar_lea.vmem %s0, %s535
          %s537 = smul.u32 16, %s27
        $region68: #{tpu_custom_call.1} parent=63 // pred_fallthru
          _
        // Predicated region
        $region69: #{tpu_custom_call.1} parent=63 // pred_check
          %p538 = pneg %p73
        $region70: #{tpu_custom_call.1} parent=63 // pred_check_branch
          %540 = sbr.rel (%p538) target = $region72
        $region71: #{tpu_custom_call.1} parent=63 // pred_region
          %s541 = smul.u32 16, %s27
          %p542 = scmp.lt.s32.totalorder %s541, 47
          %s543 = scalar_select %p542, %s541, 47
          %s544 = smul.addr %s543, 4
          %s545 = scalar_lea.vmem %s1, %s544
          %s546 = smul.u32 16, %s27
        $region72: #{tpu_custom_call.1} parent=63 // pred_fallthru
          _
        // Predicated region
        $region73: #{tpu_custom_call.1} parent=63 // pred_check
          %p547 = pneg %p99
        $region74: #{tpu_custom_call.1} parent=63 // pred_check_branch
          %549 = sbr.rel (%p547) target = $region76
        $region75: #{tpu_custom_call.1} parent=63 // pred_region
          %s550 = smul.u32 16, %s27
          %p551 = scmp.lt.s32.totalorder %s550, 47
          %s552 = scalar_select %p551, %s550, 47
          %s553 = smul.addr %s552, 8
          %s554 = scalar_lea.vmem %s2, %s553
          %s555 = smul.u32 16, %s27
        $region76: #{tpu_custom_call.1} parent=63 // pred_fallthru
          _
        // Predicated region
        $region77: #{tpu_custom_call.1} parent=63 // pred_check
          %p556 = pneg %p125
        $region78: #{tpu_custom_call.1} parent=63 // pred_check_branch
          %558 = sbr.rel (%p556) target = $region80
        $region79: #{tpu_custom_call.1} parent=63 // pred_region
          %p559 = scmp.lt.s32.totalorder %s27, 2
          %s560 = scalar_select %p559, %s27, 2
          %s561 = scalar_lea.vmem %s3, %s560
        $region80: #{tpu_custom_call.1} parent=63 // pred_fallthru
          _
      $region64: #{tpu_custom_call.1} parent=5 // pred_fallthru
        _
      %p562 = scmp.le.s32.totalorder 1, %s27
      %p563 = scmp.lt.s32.totalorder %s27, 4
      %p564 = pnand %p562, %p563
      %p565 = pneg %p564
      // Predicated region
      $region81: #{tpu_custom_call.1} parent=5 // pred_check
        _
      $region82: #{tpu_custom_call.1} parent=5 // pred_check_branch
        %567 = sbr.rel (%p564) target = $region84
      $region83: #{tpu_custom_call.1} parent=5 // pred_region
        %s568 = ssub.s32 %s27, 1
        // Predicated region
        $region85: #{tpu_custom_call.1} parent=83 // pred_check
          %p569 = pneg %p152
        $region86: #{tpu_custom_call.1} parent=83 // pred_check_branch
          %571 = sbr.rel (%p569) target = $region88
        $region87: #{tpu_custom_call.1} parent=83 // pred_region
          %572 = dma.done [#allocation4], 512
        $region88: #{tpu_custom_call.1} parent=83 // pred_fallthru
          _
        // Predicated region
        $region89: #{tpu_custom_call.1} parent=83 // pred_check
          %p573 = pneg %p173
        $region90: #{tpu_custom_call.1} parent=83 // pred_check_branch
          %575 = sbr.rel (%p573) target = $region92
        $region91: #{tpu_custom_call.1} parent=83 // pred_region
          %576 = dma.done [#allocation7], 1024
        $region92: #{tpu_custom_call.1} parent=83 // pred_fallthru
          _
        // Predicated region
        $region93: #{tpu_custom_call.1} parent=83 // pred_check
          %p577 = pneg %p194
        $region94: #{tpu_custom_call.1} parent=83 // pred_check_branch
          %579 = sbr.rel (%p577) target = $region96
        $region95: #{tpu_custom_call.1} parent=83 // pred_region
          %580 = dma.done [#allocation7], 1024
        $region96: #{tpu_custom_call.1} parent=83 // pred_fallthru
          _
        // Predicated region
        $region97: #{tpu_custom_call.1} parent=83 // pred_check
          %p581 = pneg %p257
        $region98: #{tpu_custom_call.1} parent=83 // pred_check_branch
          %583 = sbr.rel (%p581) target = $region100
        $region99: #{tpu_custom_call.1} parent=83 // pred_region
          %584 = dma.done [#allocation10], 1024
        $region100: #{tpu_custom_call.1} parent=83 // pred_fallthru
          _
        // Predicated region
        $region101: #{tpu_custom_call.1} parent=83 // pred_check
          %p585 = pneg %p299
        $region102: #{tpu_custom_call.1} parent=83 // pred_check_branch
          %587 = sbr.rel (%p585) target = $region104
        $region103: #{tpu_custom_call.1} parent=83 // pred_region
          %588 = dma.done [#allocation10], 1024
        $region104: #{tpu_custom_call.1} parent=83 // pred_fallthru
          _
        // Predicated region
        $region105: #{tpu_custom_call.1} parent=83 // pred_check
          %p589 = pneg %p320
        $region106: #{tpu_custom_call.1} parent=83 // pred_check_branch
          %591 = sbr.rel (%p589) target = $region108
        $region107: #{tpu_custom_call.1} parent=83 // pred_region
          %592 = dma.done [#allocation13], 1024
        $region108: #{tpu_custom_call.1} parent=83 // pred_fallthru
          _
        // Predicated region
        $region109: #{tpu_custom_call.1} parent=83 // pred_check
          %p593 = pneg %p362
        $region110: #{tpu_custom_call.1} parent=83 // pred_check_branch
          %595 = sbr.rel (%p593) target = $region112
        $region111: #{tpu_custom_call.1} parent=83 // pred_region
          %596 = dma.done [#allocation13], 1024
        $region112: #{tpu_custom_call.1} parent=83 // pred_fallthru
          _
        %s597 = smul.u32 16, %s32
        %p598 = scmp.lt.s32.totalorder %s597, 47
        %s599 = scalar_select %p598, %s597, 47
        %s600 = smul.addr %s599, 4
        %s601 = scalar_lea.vmem %s0, %s600
        %p602 = pneg %p53
        %p603 = pneg %p50
        %s604 = smul.u32 16, %s32
        %p605 = scmp.lt.s32.totalorder %s604, 47
        %s606 = scalar_select %p605, %s604, 47
        %s607 = smul.addr %s606, 4
        %s608 = scalar_lea.vmem %s1, %s607
        %p609 = pneg %p79
        %p610 = pneg %p76
        %s611 = smul.u32 16, %s32
        %p612 = scmp.lt.s32.totalorder %s611, 47
        %s613 = scalar_select %p612, %s611, 47
        %s614 = smul.addr %s613, 8
        %s615 = scalar_lea.vmem %s2, %s614
        %p616 = pneg %p105
        %p617 = pneg %p102
        %p618 = scmp.lt.s32.totalorder %s32, 2
        %s619 = scalar_select %p618, %s32, 2
        %s620 = scalar_lea.vmem %s3, %s619
        %p621 = pneg %p131
        %p622 = pneg %p128
        %p623 = pneg %p152
        %p624 = pneg %p149
        %p625 = pneg %p173
        %p626 = pneg %p170
        %p627 = pneg %p194
        %p628 = pneg %p191
        %p629 = pneg %p215
        %p630 = pneg %p212
        %p631 = pneg %p236
        %p632 = pneg %p233
        %p633 = pneg %p257
        %p634 = pneg %p254
        %p635 = pneg %p278
        %p636 = pneg %p275
        %p637 = pneg %p299
        %p638 = pneg %p296
        %p639 = pneg %p320
        %p640 = pneg %p317
        %p641 = pneg %p341
        %p642 = pneg %p338
        %p643 = pneg %p362
        %p644 = pneg %p359
        %p645 = pneg %p383
        %p646 = pneg %p380
        %p647 = pneg %p404
        %p648 = pneg %p401
        %s649 = smul.u32 16, %s32
        %p650 = scmp.lt.s32.totalorder %s649, 47
        %s651 = scalar_select %p650, %s649, 47
        %s652 = smul.addr %s651, 4
        %s653 = scalar_lea.vmem %s0, %s652
        %s654 = smul.u32 16, %s32
        %s655 = smul.u32 16, %s32
        %p656 = scmp.lt.s32.totalorder %s655, 47
        %s657 = scalar_select %p656, %s655, 47
        %s658 = smul.addr %s657, 4
        %s659 = scalar_lea.vmem %s1, %s658
        %s660 = smul.u32 16, %s32
        %s661 = smul.u32 16, %s32
        %p662 = scmp.lt.s32.totalorder %s661, 47
        %s663 = scalar_select %p662, %s661, 47
        %s664 = smul.addr %s663, 8
        %s665 = scalar_lea.vmem %s2, %s664
        %s666 = smul.u32 16, %s32
        %p667 = scmp.lt.s32.totalorder %s32, 2
        %s668 = scalar_select %p667, %s32, 2
        %s669 = scalar_lea.vmem %s3, %s668
        %p671 = scmp.eq.s32.totalorder %s32, 0
        // Predicated region
        $region113: #{tpu_custom_call.1} parent=83 // pred_check
          %p672 = pneg %p671
        $region114: #{tpu_custom_call.1} parent=83 // pred_check_branch
          %674 = sbr.rel (%p672) target = $region116
        $region115: #{tpu_custom_call.1} parent=83 // pred_region
          %675 = vst [vmem:[#allocation2] sm:$0xff] 0.0
          %676 = vst [vmem:[#allocation2 + $0x8] sm:$0xff] 0.0
          %677 = vst [vmem:[#allocation2 + $0x10] sm:$0xff] 0.0
          %678 = vst [vmem:[#allocation2 + $0x18] sm:$0xff] 0.0
          %679 = vst [vmem:[#allocation2 + $0x20] sm:$0xff] 0.0
          %680 = vst [vmem:[#allocation2 + $0x28] sm:$0xff] 0.0
          %681 = vst [vmem:[#allocation2 + $0x30] sm:$0xff] 0.0
          %682 = vst [vmem:[#allocation2 + $0x38] sm:$0xff] 0.0
        $region116: #{tpu_custom_call.1} parent=83 // pred_fallthru
          _
        %v683 = vld [vmem:[%s653] sm:$0xf]
        %v684 = vld [vmem:[%s653 + $0x4] sm:$0xf]
        %v685 = vld [vmem:[%s653 + $0x8] sm:$0xf]
        %v686 = vld [vmem:[%s653 + $0xc] sm:$0xf]
        %v687 = vld [vmem:[%s653 + $0x10] sm:$0xf]
        %v688 = vld [vmem:[%s653 + $0x14] sm:$0xf]
        %v689 = vld [vmem:[%s653 + $0x18] sm:$0xf]
        %v690 = vld [vmem:[%s653 + $0x1c] sm:$0xf]
        %v691 = vld [vmem:[%s653 + $0x20] sm:$0xf]
        %v692 = vld [vmem:[%s653 + $0x24] sm:$0xf]
        %v693 = vld [vmem:[%s653 + $0x28] sm:$0xf]
        %v694 = vld [vmem:[%s653 + $0x2c] sm:$0xf]
        %v695 = vld [vmem:[%s653 + $0x30] sm:$0xf]
        %v696 = vld [vmem:[%s653 + $0x34] sm:$0xf]
        %v697 = vld [vmem:[%s653 + $0x38] sm:$0xf]
        %v698 = vld [vmem:[%s653 + $0x3c] sm:$0xf]
        %v699 = vld [vmem:[%s659] sm:$0xf]
        %v700 = vld [vmem:[%s659 + $0x4] sm:$0xf]
        %v701 = vld [vmem:[%s659 + $0x8] sm:$0xf]
        %v702 = vld [vmem:[%s659 + $0xc] sm:$0xf]
        %v703 = vld [vmem:[%s659 + $0x10] sm:$0xf]
        %v704 = vld [vmem:[%s659 + $0x14] sm:$0xf]
        %v705 = vld [vmem:[%s659 + $0x18] sm:$0xf]
        %v706 = vld [vmem:[%s659 + $0x1c] sm:$0xf]
        %v707 = vld [vmem:[%s659 + $0x20] sm:$0xf]
        %v708 = vld [vmem:[%s659 + $0x24] sm:$0xf]
        %v709 = vld [vmem:[%s659 + $0x28] sm:$0xf]
        %v710 = vld [vmem:[%s659 + $0x2c] sm:$0xf]
        %v711 = vld [vmem:[%s659 + $0x30] sm:$0xf]
        %v712 = vld [vmem:[%s659 + $0x34] sm:$0xf]
        %v713 = vld [vmem:[%s659 + $0x38] sm:$0xf]
        %v714 = vld [vmem:[%s659 + $0x3c] sm:$0xf]
        %v715 = vld [vmem:[%s665] sm:$0xff]
        %v716 = vld [vmem:[%s665 + $0x8] sm:$0xff]
        %v717 = vld [vmem:[%s665 + $0x10] sm:$0xff]
        %v718 = vld [vmem:[%s665 + $0x18] sm:$0xff]
        %v719 = vld [vmem:[%s665 + $0x20] sm:$0xff]
        %v720 = vld [vmem:[%s665 + $0x28] sm:$0xff]
        %v721 = vld [vmem:[%s665 + $0x30] sm:$0xff]
        %v722 = vld [vmem:[%s665 + $0x38] sm:$0xff]
        %v723 = vld [vmem:[%s665 + $0x40] sm:$0xff]
        %v724 = vld [vmem:[%s665 + $0x48] sm:$0xff]
        %v725 = vld [vmem:[%s665 + $0x50] sm:$0xff]
        %v726 = vld [vmem:[%s665 + $0x58] sm:$0xff]
        %v727 = vld [vmem:[%s665 + $0x60] sm:$0xff]
        %v728 = vld [vmem:[%s665 + $0x68] sm:$0xff]
        %v729 = vld [vmem:[%s665 + $0x70] sm:$0xff]
        %v730 = vld [vmem:[%s665 + $0x78] sm:$0xff]
        %v731 = vld [vmem:[#allocation6] sm:$0xf]
        %v732 = vld [vmem:[#allocation6 + $0x4] sm:$0xf]
        %v733 = vld [vmem:[#allocation6 + $0x8] sm:$0xf]
        %v734 = vld [vmem:[#allocation6 + $0xc] sm:$0xf]
        %v735 = vld [vmem:[#allocation6 + $0x10] sm:$0xf]
        %v736 = vld [vmem:[#allocation6 + $0x14] sm:$0xf]
        %v737 = vld [vmem:[#allocation6 + $0x18] sm:$0xf]
        %v738 = vld [vmem:[#allocation6 + $0x1c] sm:$0xf]
        %v739 = vld [vmem:[#allocation6 + $0x20] sm:$0xf]
        %v740 = vld [vmem:[#allocation6 + $0x24] sm:$0xf]
        %v741 = vld [vmem:[#allocation6 + $0x28] sm:$0xf]
        %v742 = vld [vmem:[#allocation6 + $0x2c] sm:$0xf]
        %v743 = vld [vmem:[#allocation6 + $0x30] sm:$0xf]
        %v744 = vld [vmem:[#allocation6 + $0x34] sm:$0xf]
        %v745 = vld [vmem:[#allocation6 + $0x38] sm:$0xf]
        %v746 = vld [vmem:[#allocation6 + $0x3c] sm:$0xf]
        %v747 = vld [vmem:[#allocation8] sm:$0xf]
        %v748 = vld [vmem:[#allocation8 + $0x4] sm:$0xf]
        %v749 = vld [vmem:[#allocation8 + $0x8] sm:$0xf]
        %v750 = vld [vmem:[#allocation8 + $0xc] sm:$0xf]
        %v751 = vld [vmem:[#allocation8 + $0x10] sm:$0xf]
        %v752 = vld [vmem:[#allocation8 + $0x14] sm:$0xf]
        %v753 = vld [vmem:[#allocation8 + $0x18] sm:$0xf]
        %v754 = vld [vmem:[#allocation8 + $0x1c] sm:$0xf]
        %v755 = vld [vmem:[#allocation8 + $0x20] sm:$0xf]
        %v756 = vld [vmem:[#allocation8 + $0x24] sm:$0xf]
        %v757 = vld [vmem:[#allocation8 + $0x28] sm:$0xf]
        %v758 = vld [vmem:[#allocation8 + $0x2c] sm:$0xf]
        %v759 = vld [vmem:[#allocation8 + $0x30] sm:$0xf]
        %v760 = vld [vmem:[#allocation8 + $0x34] sm:$0xf]
        %v761 = vld [vmem:[#allocation8 + $0x38] sm:$0xf]
        %v762 = vld [vmem:[#allocation8 + $0x3c] sm:$0xf]
        %v779 = vunpack.c.l.b16 %v699
        %v780 = vunpack.c.l.b16 %v700
        %v781 = vunpack.c.l.b16 %v701
        %v782 = vunpack.c.l.b16 %v702
        %v783 = vunpack.c.l.b16 %v703
        %v784 = vunpack.c.l.b16 %v704
        %v785 = vunpack.c.l.b16 %v705
        %v786 = vunpack.c.l.b16 %v706
        %v787 = vunpack.c.l.b16 %v707
        %v788 = vunpack.c.l.b16 %v708
        %v789 = vunpack.c.l.b16 %v709
        %v790 = vunpack.c.l.b16 %v710
        %v791 = vunpack.c.l.b16 %v711
        %v792 = vunpack.c.l.b16 %v712
        %v793 = vunpack.c.l.b16 %v713
        %v794 = vunpack.c.l.b16 %v714
        %v795 = vpack.c.b16 %v780, %v779
        %v796 = vpack.c.b16 %v782, %v781
        %v797 = vpack.c.b16 %v784, %v783
        %v798 = vpack.c.b16 %v786, %v785
        %v799 = vpack.c.b16 %v788, %v787
        %v800 = vpack.c.b16 %v790, %v789
        %v801 = vpack.c.b16 %v792, %v791
        %v802 = vpack.c.b16 %v794, %v793
        %v827 = vunpack.c.l.b16 %v747
        %v828 = vunpack.c.l.b16 %v748
        %v829 = vunpack.c.l.b16 %v749
        %v830 = vunpack.c.l.b16 %v750
        %v831 = vunpack.c.l.b16 %v751
        %v832 = vunpack.c.l.b16 %v752
        %v833 = vunpack.c.l.b16 %v753
        %v834 = vunpack.c.l.b16 %v754
        %v835 = vunpack.c.l.b16 %v755
        %v836 = vunpack.c.l.b16 %v756
        %v837 = vunpack.c.l.b16 %v757
        %v838 = vunpack.c.l.b16 %v758
        %v839 = vunpack.c.l.b16 %v759
        %v840 = vunpack.c.l.b16 %v760
        %v841 = vunpack.c.l.b16 %v761
        %v842 = vunpack.c.l.b16 %v762
        %v843 = vpack.c.b16 %v828, %v827
        %v844 = vpack.c.b16 %v830, %v829
        %v845 = vpack.c.b16 %v832, %v831
        %v846 = vpack.c.b16 %v834, %v833
        %v847 = vpack.c.b16 %v836, %v835
        %v848 = vpack.c.b16 %v838, %v837
        %v849 = vpack.c.b16 %v840, %v839
        %v850 = vpack.c.b16 %v842, %v841
        %859 = vmatprep.subr.bf16.mxu0 0
        %860 = vmatpush1.bf16.msra.mxu0 %v850
        %861 = vmatprep.subr.bf16.mxu0 0
        %862 = vmatpush1.bf16.msra.mxu0 %v849
        %863 = vmatprep.subr.bf16.mxu0 0
        %864 = vmatpush1.bf16.msra.mxu0 %v848
        %865 = vmatprep.subr.bf16.mxu0 0
        %866 = vmatpush1.bf16.msra.mxu0 %v847
        %867 = vmatprep.subr.bf16.mxu0 0
        %868 = vmatpush1.bf16.msra.mxu0 %v846
        %869 = vmatprep.subr.bf16.mxu0 0
        %870 = vmatpush1.bf16.msra.mxu0 %v845
        %871 = vmatprep.subr.bf16.mxu0 0
        %872 = vmatpush1.bf16.msra.mxu0 %v844
        %873 = vmatprep.subr.bf16.mxu0 0
        %874 = vmatpush1.bf16.msra.mxu0 %v843
        %875 = vmatprep.subr.bf16.mxu0 0
        %876 = vmatpush2.bf16.msra.mxu0 0
        %877 = vmatprep.subr.bf16.mxu0 0
        %878 = vmatpush2.bf16.msra.mxu0 0
        %879 = vmatprep.subr.bf16.mxu0 0
        %880 = vmatpush2.bf16.msra.mxu0 0
        %881 = vmatprep.subr.bf16.mxu0 0
        %882 = vmatpush2.bf16.msra.mxu0 0
        %883 = vmatprep.subr.bf16.mxu0 0
        %884 = vmatpush2.bf16.msra.mxu0 0
        %885 = vmatprep.subr.bf16.mxu0 0
        %886 = vmatpush2.bf16.msra.mxu0 0
        %887 = vmatprep.subr.bf16.mxu0 0
        %888 = vmatpush2.bf16.msra.mxu0 0
        %889 = vmatprep.subr.bf16.mxu0 0
        %890 = vmatpush2.bf16.msra.mxu0 0
        %891 = vmatprep.mubr.bf16.mxu0 0
        %892 = vmatmul.mubr.bf16.gmra.mxu0 %v795
        %v893 = vpop.f32.mrf.mxu0
        %v894 = vadd.f32 0.0, %v893
        %v895 = vpop.f32.mrf.mxu0
        %v896 = vpop.f32.mrf.mxu0
        %v897 = vadd.f32 0.0, %v896
        %v898 = vpop.f32.mrf.mxu0
        %899 = vmatprep.mubr.bf16.mxu0 0
        %900 = vmatmul.mubr.bf16.gmra.mxu0 %v796
        %v901 = vpop.f32.mrf.mxu0
        %v902 = vadd.f32 0.0, %v901
        %v903 = vpop.f32.mrf.mxu0
        %v904 = vpop.f32.mrf.mxu0
        %v905 = vadd.f32 0.0, %v904
        %v906 = vpop.f32.mrf.mxu0
        %907 = vmatprep.mubr.bf16.mxu0 0
        %908 = vmatmul.mubr.bf16.gmra.mxu0 %v797
        %v909 = vpop.f32.mrf.mxu0
        %v910 = vadd.f32 0.0, %v909
        %v911 = vpop.f32.mrf.mxu0
        %v912 = vpop.f32.mrf.mxu0
        %v913 = vadd.f32 0.0, %v912
        %v914 = vpop.f32.mrf.mxu0
        %915 = vmatprep.mubr.bf16.mxu0 0
        %916 = vmatmul.mubr.bf16.gmra.mxu0 %v798
        %v917 = vpop.f32.mrf.mxu0
        %v918 = vadd.f32 0.0, %v917
        %v919 = vpop.f32.mrf.mxu0
        %v920 = vpop.f32.mrf.mxu0
        %v921 = vadd.f32 0.0, %v920
        %v922 = vpop.f32.mrf.mxu0
        %923 = vmatprep.mubr.bf16.mxu0 0
        %924 = vmatmul.mubr.bf16.gmra.mxu0 %v799
        %v925 = vpop.f32.mrf.mxu0
        %v926 = vadd.f32 0.0, %v925
        %v927 = vpop.f32.mrf.mxu0
        %v928 = vpop.f32.mrf.mxu0
        %v929 = vadd.f32 0.0, %v928
        %v930 = vpop.f32.mrf.mxu0
        %931 = vmatprep.mubr.bf16.mxu0 0
        %932 = vmatmul.mubr.bf16.gmra.mxu0 %v800
        %v933 = vpop.f32.mrf.mxu0
        %v934 = vadd.f32 0.0, %v933
        %v935 = vpop.f32.mrf.mxu0
        %v936 = vpop.f32.mrf.mxu0
        %v937 = vadd.f32 0.0, %v936
        %v938 = vpop.f32.mrf.mxu0
        %939 = vmatprep.mubr.bf16.mxu0 0
        %940 = vmatmul.mubr.bf16.gmra.mxu0 %v801
        %v941 = vpop.f32.mrf.mxu0
        %v942 = vadd.f32 0.0, %v941
        %v943 = vpop.f32.mrf.mxu0
        %v944 = vpop.f32.mrf.mxu0
        %v945 = vadd.f32 0.0, %v944
        %v946 = vpop.f32.mrf.mxu0
        %947 = vmatprep.mubr.bf16.mxu0 0
        %948 = vmatmul.mubr.bf16.gmra.mxu0 %v802
        %v949 = vpop.f32.mrf.mxu0
        %v950 = vadd.f32 0.0, %v949
        %v951 = vpop.f32.mrf.mxu0
        %v952 = vpop.f32.mrf.mxu0
        %v953 = vadd.f32 0.0, %v952
        %v954 = vpop.f32.mrf.mxu0
        %955 = vdwg.mxu0
        %v972 = vunpack.c.l.b16 %v683
        %v973 = vunpack.c.l.b16 %v684
        %v974 = vunpack.c.l.b16 %v685
        %v975 = vunpack.c.l.b16 %v686
        %v976 = vunpack.c.l.b16 %v687
        %v977 = vunpack.c.l.b16 %v688
        %v978 = vunpack.c.l.b16 %v689
        %v979 = vunpack.c.l.b16 %v690
        %v980 = vunpack.c.l.b16 %v691
        %v981 = vunpack.c.l.b16 %v692
        %v982 = vunpack.c.l.b16 %v693
        %v983 = vunpack.c.l.b16 %v694
        %v984 = vunpack.c.l.b16 %v695
        %v985 = vunpack.c.l.b16 %v696
        %v986 = vunpack.c.l.b16 %v697
        %v987 = vunpack.c.l.b16 %v698
        %v988 = vpack.c.b16 %v973, %v972
        %v989 = vpack.c.b16 %v975, %v974
        %v990 = vpack.c.b16 %v977, %v976
        %v991 = vpack.c.b16 %v979, %v978
        %v992 = vpack.c.b16 %v981, %v980
        %v993 = vpack.c.b16 %v983, %v982
        %v994 = vpack.c.b16 %v985, %v984
        %v995 = vpack.c.b16 %v987, %v986
        %v1020 = vunpack.c.l.b16 %v731
        %v1021 = vunpack.c.l.b16 %v732
        %v1022 = vunpack.c.l.b16 %v733
        %v1023 = vunpack.c.l.b16 %v734
        %v1024 = vunpack.c.l.b16 %v735
        %v1025 = vunpack.c.l.b16 %v736
        %v1026 = vunpack.c.l.b16 %v737
        %v1027 = vunpack.c.l.b16 %v738
        %v1028 = vunpack.c.l.b16 %v739
        %v1029 = vunpack.c.l.b16 %v740
        %v1030 = vunpack.c.l.b16 %v741
        %v1031 = vunpack.c.l.b16 %v742
        %v1032 = vunpack.c.l.b16 %v743
        %v1033 = vunpack.c.l.b16 %v744
        %v1034 = vunpack.c.l.b16 %v745
        %v1035 = vunpack.c.l.b16 %v746
        %v1036 = vpack.c.b16 %v1021, %v1020
        %v1037 = vpack.c.b16 %v1023, %v1022
        %v1038 = vpack.c.b16 %v1025, %v1024
        %v1039 = vpack.c.b16 %v1027, %v1026
        %v1040 = vpack.c.b16 %v1029, %v1028
        %v1041 = vpack.c.b16 %v1031, %v1030
        %v1042 = vpack.c.b16 %v1033, %v1032
        %v1043 = vpack.c.b16 %v1035, %v1034
        %1052 = vmatprep.subr.bf16.mxu0 0
        %1053 = vmatpush1.bf16.msra.mxu0 %v1043
        %1054 = vmatprep.subr.bf16.mxu0 0
        %1055 = vmatpush1.bf16.msra.mxu0 %v1042
        %1056 = vmatprep.subr.bf16.mxu0 0
        %1057 = vmatpush1.bf16.msra.mxu0 %v1041
        %1058 = vmatprep.subr.bf16.mxu0 0
        %1059 = vmatpush1.bf16.msra.mxu0 %v1040
        %1060 = vmatprep.subr.bf16.mxu0 0
        %1061 = vmatpush1.bf16.msra.mxu0 %v1039
        %1062 = vmatprep.subr.bf16.mxu0 0
        %1063 = vmatpush1.bf16.msra.mxu0 %v1038
        %1064 = vmatprep.subr.bf16.mxu0 0
        %1065 = vmatpush1.bf16.msra.mxu0 %v1037
        %1066 = vmatprep.subr.bf16.mxu0 0
        %1067 = vmatpush1.bf16.msra.mxu0 %v1036
        %1068 = vmatprep.subr.bf16.mxu0 0
        %1069 = vmatpush2.bf16.msra.mxu0 0
        %1070 = vmatprep.subr.bf16.mxu0 0
        %1071 = vmatpush2.bf16.msra.mxu0 0
        %1072 = vmatprep.subr.bf16.mxu0 0
        %1073 = vmatpush2.bf16.msra.mxu0 0
        %1074 = vmatprep.subr.bf16.mxu0 0
        %1075 = vmatpush2.bf16.msra.mxu0 0
        %1076 = vmatprep.subr.bf16.mxu0 0
        %1077 = vmatpush2.bf16.msra.mxu0 0
        %1078 = vmatprep.subr.bf16.mxu0 0
        %1079 = vmatpush2.bf16.msra.mxu0 0
        %1080 = vmatprep.subr.bf16.mxu0 0
        %1081 = vmatpush2.bf16.msra.mxu0 0
        %1082 = vmatprep.subr.bf16.mxu0 0
        %1083 = vmatpush2.bf16.msra.mxu0 0
        %1084 = vmatprep.mubr.bf16.mxu0 0
        %1085 = vmatmul.mubr.bf16.gmra.mxu0 %v988
        %v1086 = vpop.f32.mrf.mxu0
        %v1087 = vadd.f32 %v894, %v1086
        %v1088 = vpop.f32.mrf.mxu0
        %v1089 = vpop.f32.mrf.mxu0
        %v1090 = vadd.f32 %v897, %v1089
        %v1091 = vpop.f32.mrf.mxu0
        %1092 = vmatprep.mubr.bf16.mxu0 0
        %1093 = vmatmul.mubr.bf16.gmra.mxu0 %v989
        %v1094 = vpop.f32.mrf.mxu0
        %v1095 = vadd.f32 %v902, %v1094
        %v1096 = vpop.f32.mrf.mxu0
        %v1097 = vpop.f32.mrf.mxu0
        %v1098 = vadd.f32 %v905, %v1097
        %v1099 = vpop.f32.mrf.mxu0
        %1100 = vmatprep.mubr.bf16.mxu0 0
        %1101 = vmatmul.mubr.bf16.gmra.mxu0 %v990
        %v1102 = vpop.f32.mrf.mxu0
        %v1103 = vadd.f32 %v910, %v1102
        %v1104 = vpop.f32.mrf.mxu0
        %v1105 = vpop.f32.mrf.mxu0
        %v1106 = vadd.f32 %v913, %v1105
        %v1107 = vpop.f32.mrf.mxu0
        %1108 = vmatprep.mubr.bf16.mxu0 0
        %1109 = vmatmul.mubr.bf16.gmra.mxu0 %v991
        %v1110 = vpop.f32.mrf.mxu0
        %v1111 = vadd.f32 %v918, %v1110
        %v1112 = vpop.f32.mrf.mxu0
        %v1113 = vpop.f32.mrf.mxu0
        %v1114 = vadd.f32 %v921, %v1113
        %v1115 = vpop.f32.mrf.mxu0
        %1116 = vmatprep.mubr.bf16.mxu0 0
        %1117 = vmatmul.mubr.bf16.gmra.mxu0 %v992
        %v1118 = vpop.f32.mrf.mxu0
        %v1119 = vadd.f32 %v926, %v1118
        %v1120 = vpop.f32.mrf.mxu0
        %v1121 = vpop.f32.mrf.mxu0
        %v1122 = vadd.f32 %v929, %v1121
        %v1123 = vpop.f32.mrf.mxu0
        %1124 = vmatprep.mubr.bf16.mxu0 0
        %1125 = vmatmul.mubr.bf16.gmra.mxu0 %v993
        %v1126 = vpop.f32.mrf.mxu0
        %v1127 = vadd.f32 %v934, %v1126
        %v1128 = vpop.f32.mrf.mxu0
        %v1129 = vpop.f32.mrf.mxu0
        %v1130 = vadd.f32 %v937, %v1129
        %v1131 = vpop.f32.mrf.mxu0
        %1132 = vmatprep.mubr.bf16.mxu0 0
        %1133 = vmatmul.mubr.bf16.gmra.mxu0 %v994
        %v1134 = vpop.f32.mrf.mxu0
        %v1135 = vadd.f32 %v942, %v1134
        %v1136 = vpop.f32.mrf.mxu0
        %v1137 = vpop.f32.mrf.mxu0
        %v1138 = vadd.f32 %v945, %v1137
        %v1139 = vpop.f32.mrf.mxu0
        %1140 = vmatprep.mubr.bf16.mxu0 0
        %1141 = vmatmul.mubr.bf16.gmra.mxu0 %v995
        %v1142 = vpop.f32.mrf.mxu0
        %v1143 = vadd.f32 %v950, %v1142
        %v1144 = vpop.f32.mrf.mxu0
        %v1145 = vpop.f32.mrf.mxu0
        %v1146 = vadd.f32 %v953, %v1145
        %v1147 = vpop.f32.mrf.mxu0
        %1148 = vdwg.mxu0
        %v1149 = vld [vmem:[%s7] sm:$0x1]
        %1151 = vset.pattern.permute.xlu0 0
        %1152 = vperm.xlu0 %1151, %v715
        %v1153 = vpop.permute.xlu0 %1152
        %1156 = vset.pattern.permute.xlu0 0
        %1157 = vperm.xlu0 %1156, %v716
        %v1158 = vpop.permute.xlu0 %1157
        %1161 = vset.pattern.permute.xlu0 0
        %1162 = vperm.xlu0 %1161, %v717
        %v1163 = vpop.permute.xlu0 %1162
        %1166 = vset.pattern.permute.xlu0 0
        %1167 = vperm.xlu0 %1166, %v718
        %v1168 = vpop.permute.xlu0 %1167
        %1171 = vset.pattern.permute.xlu0 0
        %1172 = vperm.xlu0 %1171, %v719
        %v1173 = vpop.permute.xlu0 %1172
        %1176 = vset.pattern.permute.xlu0 0
        %1177 = vperm.xlu0 %1176, %v720
        %v1178 = vpop.permute.xlu0 %1177
        %1181 = vset.pattern.permute.xlu0 0
        %1182 = vperm.xlu0 %1181, %v721
        %v1183 = vpop.permute.xlu0 %1182
        %1186 = vset.pattern.permute.xlu0 0
        %1187 = vperm.xlu0 %1186, %v722
        %v1188 = vpop.permute.xlu0 %1187
        %1191 = vset.pattern.permute.xlu0 0
        %1192 = vperm.xlu0 %1191, %v723
        %v1193 = vpop.permute.xlu0 %1192
        %1196 = vset.pattern.permute.xlu0 0
        %1197 = vperm.xlu0 %1196, %v724
        %v1198 = vpop.permute.xlu0 %1197
        %1201 = vset.pattern.permute.xlu0 0
        %1202 = vperm.xlu0 %1201, %v725
        %v1203 = vpop.permute.xlu0 %1202
        %1206 = vset.pattern.permute.xlu0 0
        %1207 = vperm.xlu0 %1206, %v726
        %v1208 = vpop.permute.xlu0 %1207
        %1211 = vset.pattern.permute.xlu0 0
        %1212 = vperm.xlu0 %1211, %v727
        %v1213 = vpop.permute.xlu0 %1212
        %1216 = vset.pattern.permute.xlu0 0
        %1217 = vperm.xlu0 %1216, %v728
        %v1218 = vpop.permute.xlu0 %1217
        %1221 = vset.pattern.permute.xlu0 0
        %1222 = vperm.xlu0 %1221, %v729
        %v1223 = vpop.permute.xlu0 %1222
        %1226 = vset.pattern.permute.xlu0 0
        %1227 = vperm.xlu0 %1226, %v730
        %v1228 = vpop.permute.xlu0 %1227
        %v1231 = vlaneseq
        %v1232 = vshrl.u32 %v1231, 7
        %v1233 = vsub.s32 0, %v1232
        %v1234 = vrot.slane %v1149, %v1233
        %v1236 = vmul.f32 %v1153, %v1234
        %v1237 = vmul.f32 %v1158, %v1234
        %v1238 = vmul.f32 %v1163, %v1234
        %v1239 = vmul.f32 %v1168, %v1234
        %v1240 = vmul.f32 %v1173, %v1234
        %v1241 = vmul.f32 %v1178, %v1234
        %v1242 = vmul.f32 %v1183, %v1234
        %v1243 = vmul.f32 %v1188, %v1234
        %v1244 = vmul.f32 %v1193, %v1234
        %v1245 = vmul.f32 %v1198, %v1234
        %v1246 = vmul.f32 %v1203, %v1234
        %v1247 = vmul.f32 %v1208, %v1234
        %v1248 = vmul.f32 %v1213, %v1234
        %v1249 = vmul.f32 %v1218, %v1234
        %v1250 = vmul.f32 %v1223, %v1234
        %v1251 = vmul.f32 %v1228, %v1234
        %v1252 = vadd.f32 %v1087, %v1236
        %v1253 = vadd.f32 %v1090, %v1237
        %v1254 = vadd.f32 %v1095, %v1238
        %v1255 = vadd.f32 %v1098, %v1239
        %v1256 = vadd.f32 %v1103, %v1240
        %v1257 = vadd.f32 %v1106, %v1241
        %v1258 = vadd.f32 %v1111, %v1242
        %v1259 = vadd.f32 %v1114, %v1243
        %v1260 = vadd.f32 %v1119, %v1244
        %v1261 = vadd.f32 %v1122, %v1245
        %v1262 = vadd.f32 %v1127, %v1246
        %v1263 = vadd.f32 %v1130, %v1247
        %v1264 = vadd.f32 %v1135, %v1248
        %v1265 = vadd.f32 %v1138, %v1249
        %v1266 = vadd.f32 %v1143, %v1250
        %v1267 = vadd.f32 %v1146, %v1251
        %v1268 = vld [vmem:[%s8] sm:$0x1]
        %v1270 = vlaneseq
        %v1271 = vshrl.u32 %v1270, 7
        %v1272 = vsub.s32 0, %v1271
        %v1273 = vrot.slane %v1268, %v1272
        %v1275 = vadd.f32 %v1252, %v1273
        %v1276 = vadd.f32 %v1253, %v1273
        %v1277 = vadd.f32 %v1254, %v1273
        %v1278 = vadd.f32 %v1255, %v1273
        %v1279 = vadd.f32 %v1256, %v1273
        %v1280 = vadd.f32 %v1257, %v1273
        %v1281 = vadd.f32 %v1258, %v1273
        %v1282 = vadd.f32 %v1259, %v1273
        %v1283 = vadd.f32 %v1260, %v1273
        %v1284 = vadd.f32 %v1261, %v1273
        %v1285 = vadd.f32 %v1262, %v1273
        %v1286 = vadd.f32 %v1263, %v1273
        %v1287 = vadd.f32 %v1264, %v1273
        %v1288 = vadd.f32 %v1265, %v1273
        %v1289 = vadd.f32 %v1266, %v1273
        %v1290 = vadd.f32 %v1267, %v1273
        %v1291 = vxor.u32 %v1275, 2147483648
        %v1292 = vxor.u32 %v1276, 2147483648
        %v1293 = vxor.u32 %v1277, 2147483648
        %v1294 = vxor.u32 %v1278, 2147483648
        %v1295 = vxor.u32 %v1279, 2147483648
        %v1296 = vxor.u32 %v1280, 2147483648
        %v1297 = vxor.u32 %v1281, 2147483648
        %v1298 = vxor.u32 %v1282, 2147483648
        %v1299 = vxor.u32 %v1283, 2147483648
        %v1300 = vxor.u32 %v1284, 2147483648
        %v1301 = vxor.u32 %v1285, 2147483648
        %v1302 = vxor.u32 %v1286, 2147483648
        %v1303 = vxor.u32 %v1287, 2147483648
        %v1304 = vxor.u32 %v1288, 2147483648
        %v1305 = vxor.u32 %v1289, 2147483648
        %v1306 = vxor.u32 %v1290, 2147483648
        %v1307 = vmul.f32 %v1291, 1.442695
        %v1308 = vpow.pop %v1307
        %v1309 = vmul.f32 %v1292, 1.442695
        %v1310 = vpow.pop %v1309
        %v1311 = vmul.f32 %v1293, 1.442695
        %v1312 = vpow.pop %v1311
        %v1313 = vmul.f32 %v1294, 1.442695
        %v1314 = vpow.pop %v1313
        %v1315 = vmul.f32 %v1295, 1.442695
        %v1316 = vpow.pop %v1315
        %v1317 = vmul.f32 %v1296, 1.442695
        %v1318 = vpow.pop %v1317
        %v1319 = vmul.f32 %v1297, 1.442695
        %v1320 = vpow.pop %v1319
        %v1321 = vmul.f32 %v1298, 1.442695
        %v1322 = vpow.pop %v1321
        %v1323 = vmul.f32 %v1299, 1.442695
        %v1324 = vpow.pop %v1323
        %v1325 = vmul.f32 %v1300, 1.442695
        %v1326 = vpow.pop %v1325
        %v1327 = vmul.f32 %v1301, 1.442695
        %v1328 = vpow.pop %v1327
        %v1329 = vmul.f32 %v1302, 1.442695
        %v1330 = vpow.pop %v1329
        %v1331 = vmul.f32 %v1303, 1.442695
        %v1332 = vpow.pop %v1331
        %v1333 = vmul.f32 %v1304, 1.442695
        %v1334 = vpow.pop %v1333
        %v1335 = vmul.f32 %v1305, 1.442695
        %v1336 = vpow.pop %v1335
        %v1337 = vmul.f32 %v1306, 1.442695
        %v1338 = vpow.pop %v1337
        %v1339 = vadd.f32 %v1308, 1.0
        %v1340 = vadd.f32 %v1310, 1.0
        %v1341 = vadd.f32 %v1312, 1.0
        %v1342 = vadd.f32 %v1314, 1.0
        %v1343 = vadd.f32 %v1316, 1.0
        %v1344 = vadd.f32 %v1318, 1.0
        %v1345 = vadd.f32 %v1320, 1.0
        %v1346 = vadd.f32 %v1322, 1.0
        %v1347 = vadd.f32 %v1324, 1.0
        %v1348 = vadd.f32 %v1326, 1.0
        %v1349 = vadd.f32 %v1328, 1.0
        %v1350 = vadd.f32 %v1330, 1.0
        %v1351 = vadd.f32 %v1332, 1.0
        %v1352 = vadd.f32 %v1334, 1.0
        %v1353 = vadd.f32 %v1336, 1.0
        %v1354 = vadd.f32 %v1338, 1.0
        %v1355 = vrcp.pop %v1339
        %v1356 = vmul.f32 1.0, %v1355
        %v1357 = vrcp.pop %v1340
        %v1358 = vmul.f32 1.0, %v1357
        %v1359 = vrcp.pop %v1341
        %v1360 = vmul.f32 1.0, %v1359
        %v1361 = vrcp.pop %v1342
        %v1362 = vmul.f32 1.0, %v1361
        %v1363 = vrcp.pop %v1343
        %v1364 = vmul.f32 1.0, %v1363
        %v1365 = vrcp.pop %v1344
        %v1366 = vmul.f32 1.0, %v1365
        %v1367 = vrcp.pop %v1345
        %v1368 = vmul.f32 1.0, %v1367
        %v1369 = vrcp.pop %v1346
        %v1370 = vmul.f32 1.0, %v1369
        %v1371 = vrcp.pop %v1347
        %v1372 = vmul.f32 1.0, %v1371
        %v1373 = vrcp.pop %v1348
        %v1374 = vmul.f32 1.0, %v1373
        %v1375 = vrcp.pop %v1349
        %v1376 = vmul.f32 1.0, %v1375
        %v1377 = vrcp.pop %v1350
        %v1378 = vmul.f32 1.0, %v1377
        %v1379 = vrcp.pop %v1351
        %v1380 = vmul.f32 1.0, %v1379
        %v1381 = vrcp.pop %v1352
        %v1382 = vmul.f32 1.0, %v1381
        %v1383 = vrcp.pop %v1353
        %v1384 = vmul.f32 1.0, %v1383
        %v1385 = vrcp.pop %v1354
        %v1386 = vmul.f32 1.0, %v1385
        %v1387 = vmul.f32 %v1275, %v1356
        %v1388 = vmul.f32 %v1276, %v1358
        %v1389 = vmul.f32 %v1277, %v1360
        %v1390 = vmul.f32 %v1278, %v1362
        %v1391 = vmul.f32 %v1279, %v1364
        %v1392 = vmul.f32 %v1280, %v1366
        %v1393 = vmul.f32 %v1281, %v1368
        %v1394 = vmul.f32 %v1282, %v1370
        %v1395 = vmul.f32 %v1283, %v1372
        %v1396 = vmul.f32 %v1284, %v1374
        %v1397 = vmul.f32 %v1285, %v1376
        %v1398 = vmul.f32 %v1286, %v1378
        %v1399 = vmul.f32 %v1287, %v1380
        %v1400 = vmul.f32 %v1288, %v1382
        %v1401 = vmul.f32 %v1289, %v1384
        %v1402 = vmul.f32 %v1290, %v1386
        %v1403 = vpack.c.bf16 %v1388, %v1387
        %v1404 = vpack.c.bf16 %v1390, %v1389
        %v1405 = vpack.c.bf16 %v1392, %v1391
        %v1406 = vpack.c.bf16 %v1394, %v1393
        %v1407 = vpack.c.bf16 %v1396, %v1395
        %v1408 = vpack.c.bf16 %v1398, %v1397
        %v1409 = vpack.c.bf16 %v1400, %v1399
        %v1410 = vpack.c.bf16 %v1402, %v1401
        %v1411 = vld [vmem:[#allocation9] sm:$0xf]
        %v1412 = vld [vmem:[#allocation9 + $0x4] sm:$0xf]
        %v1413 = vld [vmem:[#allocation9 + $0x8] sm:$0xf]
        %v1414 = vld [vmem:[#allocation9 + $0xc] sm:$0xf]
        %v1415 = vld [vmem:[#allocation9 + $0x10] sm:$0xf]
        %v1416 = vld [vmem:[#allocation9 + $0x14] sm:$0xf]
        %v1417 = vld [vmem:[#allocation9 + $0x18] sm:$0xf]
        %v1418 = vld [vmem:[#allocation9 + $0x1c] sm:$0xf]
        %v1419 = vld [vmem:[#allocation9 + $0x20] sm:$0xf]
        %v1420 = vld [vmem:[#allocation9 + $0x24] sm:$0xf]
        %v1421 = vld [vmem:[#allocation9 + $0x28] sm:$0xf]
        %v1422 = vld [vmem:[#allocation9 + $0x2c] sm:$0xf]
        %v1423 = vld [vmem:[#allocation9 + $0x30] sm:$0xf]
        %v1424 = vld [vmem:[#allocation9 + $0x34] sm:$0xf]
        %v1425 = vld [vmem:[#allocation9 + $0x38] sm:$0xf]
        %v1426 = vld [vmem:[#allocation9 + $0x3c] sm:$0xf]
        %v1427 = vld [vmem:[%s10] sm:$0x1]
        %v1429 = vlaneseq
        %v1430 = vshrl.u32 %v1429, 7
        %v1431 = vsub.s32 0, %v1430
        %v1432 = vrot.slane %v1427, %v1431
        %v1450 = vunpack.c.l.b16 %v1411
        %v1451 = vunpack.c.l.b16 %v1412
        %v1452 = vunpack.c.l.b16 %v1413
        %v1453 = vunpack.c.l.b16 %v1414
        %v1454 = vunpack.c.l.b16 %v1415
        %v1455 = vunpack.c.l.b16 %v1416
        %v1456 = vunpack.c.l.b16 %v1417
        %v1457 = vunpack.c.l.b16 %v1418
        %v1458 = vunpack.c.l.b16 %v1419
        %v1459 = vunpack.c.l.b16 %v1420
        %v1460 = vunpack.c.l.b16 %v1421
        %v1461 = vunpack.c.l.b16 %v1422
        %v1462 = vunpack.c.l.b16 %v1423
        %v1463 = vunpack.c.l.b16 %v1424
        %v1464 = vunpack.c.l.b16 %v1425
        %v1465 = vunpack.c.l.b16 %v1426
        %v1466 = vpack.c.b16 %v1451, %v1450
        %v1467 = vpack.c.b16 %v1453, %v1452
        %v1468 = vpack.c.b16 %v1455, %v1454
        %v1469 = vpack.c.b16 %v1457, %v1456
        %v1470 = vpack.c.b16 %v1459, %v1458
        %v1471 = vpack.c.b16 %v1461, %v1460
        %v1472 = vpack.c.b16 %v1463, %v1462
        %v1473 = vpack.c.b16 %v1465, %v1464
        %1482 = vmatprep.subr.bf16.mxu0 0
        %1483 = vmatpush1.bf16.msra.mxu0 %v1473
        %1484 = vmatprep.subr.bf16.mxu0 0
        %1485 = vmatpush1.bf16.msra.mxu0 %v1472
        %1486 = vmatprep.subr.bf16.mxu0 0
        %1487 = vmatpush1.bf16.msra.mxu0 %v1471
        %1488 = vmatprep.subr.bf16.mxu0 0
        %1489 = vmatpush1.bf16.msra.mxu0 %v1470
        %1490 = vmatprep.subr.bf16.mxu0 0
        %1491 = vmatpush1.bf16.msra.mxu0 %v1469
        %1492 = vmatprep.subr.bf16.mxu0 0
        %1493 = vmatpush1.bf16.msra.mxu0 %v1468
        %1494 = vmatprep.subr.bf16.mxu0 0
        %1495 = vmatpush1.bf16.msra.mxu0 %v1467
        %1496 = vmatprep.subr.bf16.mxu0 0
        %1497 = vmatpush1.bf16.msra.mxu0 %v1466
        %1498 = vmatprep.subr.bf16.mxu0 0
        %1499 = vmatpush2.bf16.msra.mxu0 0
        %1500 = vmatprep.subr.bf16.mxu0 0
        %1501 = vmatpush2.bf16.msra.mxu0 0
        %1502 = vmatprep.subr.bf16.mxu0 0
        %1503 = vmatpush2.bf16.msra.mxu0 0
        %1504 = vmatprep.subr.bf16.mxu0 0
        %1505 = vmatpush2.bf16.msra.mxu0 0
        %1506 = vmatprep.subr.bf16.mxu0 0
        %1507 = vmatpush2.bf16.msra.mxu0 0
        %1508 = vmatprep.subr.bf16.mxu0 0
        %1509 = vmatpush2.bf16.msra.mxu0 0
        %1510 = vmatprep.subr.bf16.mxu0 0
        %1511 = vmatpush2.bf16.msra.mxu0 0
        %1512 = vmatprep.subr.bf16.mxu0 0
        %1513 = vmatpush2.bf16.msra.mxu0 0
        %1514 = vmatprep.mubr.bf16.mxu0 0
        %1515 = vmatmul.mubr.bf16.gmra.mxu0 %v1403
        %v1516 = vpop.f32.mrf.mxu0
        %v1517 = vadd.f32 %v1432, %v1516
        %v1518 = vpop.f32.mrf.mxu0
        %v1519 = vpop.f32.mrf.mxu0
        %v1520 = vadd.f32 %v1432, %v1519
        %v1521 = vpop.f32.mrf.mxu0
        %1522 = vmatprep.mubr.bf16.mxu0 0
        %1523 = vmatmul.mubr.bf16.gmra.mxu0 %v1404
        %v1524 = vpop.f32.mrf.mxu0
        %v1525 = vadd.f32 %v1432, %v1524
        %v1526 = vpop.f32.mrf.mxu0
        %v1527 = vpop.f32.mrf.mxu0
        %v1528 = vadd.f32 %v1432, %v1527
        %v1529 = vpop.f32.mrf.mxu0
        %1530 = vmatprep.mubr.bf16.mxu0 0
        %1531 = vmatmul.mubr.bf16.gmra.mxu0 %v1405
        %v1532 = vpop.f32.mrf.mxu0
        %v1533 = vadd.f32 %v1432, %v1532
        %v1534 = vpop.f32.mrf.mxu0
        %v1535 = vpop.f32.mrf.mxu0
        %v1536 = vadd.f32 %v1432, %v1535
        %v1537 = vpop.f32.mrf.mxu0
        %1538 = vmatprep.mubr.bf16.mxu0 0
        %1539 = vmatmul.mubr.bf16.gmra.mxu0 %v1406
        %v1540 = vpop.f32.mrf.mxu0
        %v1541 = vadd.f32 %v1432, %v1540
        %v1542 = vpop.f32.mrf.mxu0
        %v1543 = vpop.f32.mrf.mxu0
        %v1544 = vadd.f32 %v1432, %v1543
        %v1545 = vpop.f32.mrf.mxu0
        %1546 = vmatprep.mubr.bf16.mxu0 0
        %1547 = vmatmul.mubr.bf16.gmra.mxu0 %v1407
        %v1548 = vpop.f32.mrf.mxu0
        %v1549 = vadd.f32 %v1432, %v1548
        %v1550 = vpop.f32.mrf.mxu0
        %v1551 = vpop.f32.mrf.mxu0
        %v1552 = vadd.f32 %v1432, %v1551
        %v1553 = vpop.f32.mrf.mxu0
        %1554 = vmatprep.mubr.bf16.mxu0 0
        %1555 = vmatmul.mubr.bf16.gmra.mxu0 %v1408
        %v1556 = vpop.f32.mrf.mxu0
        %v1557 = vadd.f32 %v1432, %v1556
        %v1558 = vpop.f32.mrf.mxu0
        %v1559 = vpop.f32.mrf.mxu0
        %v1560 = vadd.f32 %v1432, %v1559
        %v1561 = vpop.f32.mrf.mxu0
        %1562 = vmatprep.mubr.bf16.mxu0 0
        %1563 = vmatmul.mubr.bf16.gmra.mxu0 %v1409
        %v1564 = vpop.f32.mrf.mxu0
        %v1565 = vadd.f32 %v1432, %v1564
        %v1566 = vpop.f32.mrf.mxu0
        %v1567 = vpop.f32.mrf.mxu0
        %v1568 = vadd.f32 %v1432, %v1567
        %v1569 = vpop.f32.mrf.mxu0
        %1570 = vmatprep.mubr.bf16.mxu0 0
        %1571 = vmatmul.mubr.bf16.gmra.mxu0 %v1410
        %v1572 = vpop.f32.mrf.mxu0
        %v1573 = vadd.f32 %v1432, %v1572
        %v1574 = vpop.f32.mrf.mxu0
        %v1575 = vpop.f32.mrf.mxu0
        %v1576 = vadd.f32 %v1432, %v1575
        %v1577 = vpop.f32.mrf.mxu0
        %1578 = vdwg.mxu0
        %v1579 = vxor.u32 %v1517, 2147483648
        %v1580 = vxor.u32 %v1520, 2147483648
        %v1581 = vxor.u32 %v1525, 2147483648
        %v1582 = vxor.u32 %v1528, 2147483648
        %v1583 = vxor.u32 %v1533, 2147483648
        %v1584 = vxor.u32 %v1536, 2147483648
        %v1585 = vxor.u32 %v1541, 2147483648
        %v1586 = vxor.u32 %v1544, 2147483648
        %v1587 = vxor.u32 %v1549, 2147483648
        %v1588 = vxor.u32 %v1552, 2147483648
        %v1589 = vxor.u32 %v1557, 2147483648
        %v1590 = vxor.u32 %v1560, 2147483648
        %v1591 = vxor.u32 %v1565, 2147483648
        %v1592 = vxor.u32 %v1568, 2147483648
        %v1593 = vxor.u32 %v1573, 2147483648
        %v1594 = vxor.u32 %v1576, 2147483648
        %v1595 = vmul.f32 %v1579, 1.442695
        %v1596 = vpow.pop %v1595
        %v1597 = vmul.f32 %v1580, 1.442695
        %v1598 = vpow.pop %v1597
        %v1599 = vmul.f32 %v1581, 1.442695
        %v1600 = vpow.pop %v1599
        %v1601 = vmul.f32 %v1582, 1.442695
        %v1602 = vpow.pop %v1601
        %v1603 = vmul.f32 %v1583, 1.442695
        %v1604 = vpow.pop %v1603
        %v1605 = vmul.f32 %v1584, 1.442695
        %v1606 = vpow.pop %v1605
        %v1607 = vmul.f32 %v1585, 1.442695
        %v1608 = vpow.pop %v1607
        %v1609 = vmul.f32 %v1586, 1.442695
        %v1610 = vpow.pop %v1609
        %v1611 = vmul.f32 %v1587, 1.442695
        %v1612 = vpow.pop %v1611
        %v1613 = vmul.f32 %v1588, 1.442695
        %v1614 = vpow.pop %v1613
        %v1615 = vmul.f32 %v1589, 1.442695
        %v1616 = vpow.pop %v1615
        %v1617 = vmul.f32 %v1590, 1.442695
        %v1618 = vpow.pop %v1617
        %v1619 = vmul.f32 %v1591, 1.442695
        %v1620 = vpow.pop %v1619
        %v1621 = vmul.f32 %v1592, 1.442695
        %v1622 = vpow.pop %v1621
        %v1623 = vmul.f32 %v1593, 1.442695
        %v1624 = vpow.pop %v1623
        %v1625 = vmul.f32 %v1594, 1.442695
        %v1626 = vpow.pop %v1625
        %v1627 = vadd.f32 %v1596, 1.0
        %v1628 = vadd.f32 %v1598, 1.0
        %v1629 = vadd.f32 %v1600, 1.0
        %v1630 = vadd.f32 %v1602, 1.0
        %v1631 = vadd.f32 %v1604, 1.0
        %v1632 = vadd.f32 %v1606, 1.0
        %v1633 = vadd.f32 %v1608, 1.0
        %v1634 = vadd.f32 %v1610, 1.0
        %v1635 = vadd.f32 %v1612, 1.0
        %v1636 = vadd.f32 %v1614, 1.0
        %v1637 = vadd.f32 %v1616, 1.0
        %v1638 = vadd.f32 %v1618, 1.0
        %v1639 = vadd.f32 %v1620, 1.0
        %v1640 = vadd.f32 %v1622, 1.0
        %v1641 = vadd.f32 %v1624, 1.0
        %v1642 = vadd.f32 %v1626, 1.0
        %v1643 = vrcp.pop %v1627
        %v1644 = vmul.f32 1.0, %v1643
        %v1645 = vrcp.pop %v1628
        %v1646 = vmul.f32 1.0, %v1645
        %v1647 = vrcp.pop %v1629
        %v1648 = vmul.f32 1.0, %v1647
        %v1649 = vrcp.pop %v1630
        %v1650 = vmul.f32 1.0, %v1649
        %v1651 = vrcp.pop %v1631
        %v1652 = vmul.f32 1.0, %v1651
        %v1653 = vrcp.pop %v1632
        %v1654 = vmul.f32 1.0, %v1653
        %v1655 = vrcp.pop %v1633
        %v1656 = vmul.f32 1.0, %v1655
        %v1657 = vrcp.pop %v1634
        %v1658 = vmul.f32 1.0, %v1657
        %v1659 = vrcp.pop %v1635
        %v1660 = vmul.f32 1.0, %v1659
        %v1661 = vrcp.pop %v1636
        %v1662 = vmul.f32 1.0, %v1661
        %v1663 = vrcp.pop %v1637
        %v1664 = vmul.f32 1.0, %v1663
        %v1665 = vrcp.pop %v1638
        %v1666 = vmul.f32 1.0, %v1665
        %v1667 = vrcp.pop %v1639
        %v1668 = vmul.f32 1.0, %v1667
        %v1669 = vrcp.pop %v1640
        %v1670 = vmul.f32 1.0, %v1669
        %v1671 = vrcp.pop %v1641
        %v1672 = vmul.f32 1.0, %v1671
        %v1673 = vrcp.pop %v1642
        %v1674 = vmul.f32 1.0, %v1673
        %v1675 = vmul.f32 %v1517, %v1644
        %v1676 = vmul.f32 %v1520, %v1646
        %v1677 = vmul.f32 %v1525, %v1648
        %v1678 = vmul.f32 %v1528, %v1650
        %v1679 = vmul.f32 %v1533, %v1652
        %v1680 = vmul.f32 %v1536, %v1654
        %v1681 = vmul.f32 %v1541, %v1656
        %v1682 = vmul.f32 %v1544, %v1658
        %v1683 = vmul.f32 %v1549, %v1660
        %v1684 = vmul.f32 %v1552, %v1662
        %v1685 = vmul.f32 %v1557, %v1664
        %v1686 = vmul.f32 %v1560, %v1666
        %v1687 = vmul.f32 %v1565, %v1668
        %v1688 = vmul.f32 %v1568, %v1670
        %v1689 = vmul.f32 %v1573, %v1672
        %v1690 = vmul.f32 %v1576, %v1674
        %v1691 = vlaneseq
        %v1692 = vshrl.u32 %v1691, 7
        %v1693 = vadd.s32 %v1692, 8
        %v1694 = vadd.s32 %v1692, 16
        %v1695 = vadd.s32 %v1692, 24
        %v1696 = vadd.s32 %v1692, 32
        %v1697 = vadd.s32 %v1692, 40
        %v1698 = vadd.s32 %v1692, 48
        %v1699 = vadd.s32 %v1692, 56
        %v1700 = vld [vmem:[%s669] sm:$0x1]
        %v1701 = vlaneseq
        %v1702 = vshrl.u32 %v1701, 7
        %v1703 = vsub.s32 0, %v1702
        %v1704 = vrot.slane %v1700, %v1703
        %vm1705 = vcmp.eq.s32.totalorder %v1692, %v1704
        %vm1706 = vcmp.eq.s32.totalorder %v1693, %v1704
        %vm1707 = vcmp.eq.s32.totalorder %v1694, %v1704
        %vm1708 = vcmp.eq.s32.totalorder %v1695, %v1704
        %vm1709 = vcmp.eq.s32.totalorder %v1696, %v1704
        %vm1710 = vcmp.eq.s32.totalorder %v1697, %v1704
        %vm1711 = vcmp.eq.s32.totalorder %v1698, %v1704
        %vm1712 = vcmp.eq.s32.totalorder %v1699, %v1704
        %v1713 = vsel %vm1705, 1, 0
        %v1714 = vsel %vm1706, 1, 0
        %v1715 = vsel %vm1707, 1, 0
        %v1716 = vsel %vm1708, 1, 0
        %v1717 = vsel %vm1709, 1, 0
        %v1718 = vsel %vm1710, 1, 0
        %v1719 = vsel %vm1711, 1, 0
        %v1720 = vsel %vm1712, 1, 0
        %v1721 = vcvt.s32.f32 %v1713
        %v1722 = vcvt.s32.f32 %v1714
        %v1723 = vcvt.s32.f32 %v1715
        %v1724 = vcvt.s32.f32 %v1716
        %v1725 = vcvt.s32.f32 %v1717
        %v1726 = vcvt.s32.f32 %v1718
        %v1727 = vcvt.s32.f32 %v1719
        %v1728 = vcvt.s32.f32 %v1720
        %v1729 = vpack.c.bf16 %v1722, %v1721
        %v1730 = vpack.c.bf16 %v1724, %v1723
        %v1731 = vpack.c.bf16 %v1726, %v1725
        %v1732 = vpack.c.bf16 %v1728, %v1727
        %v1733 = vld [vmem:[#allocation2] sm:$0xff]
        %v1734 = vld [vmem:[#allocation2 + $0x8] sm:$0xff]
        %v1735 = vld [vmem:[#allocation2 + $0x10] sm:$0xff]
        %v1736 = vld [vmem:[#allocation2 + $0x18] sm:$0xff]
        %v1737 = vld [vmem:[#allocation2 + $0x20] sm:$0xff]
        %v1738 = vld [vmem:[#allocation2 + $0x28] sm:$0xff]
        %v1739 = vld [vmem:[#allocation2 + $0x30] sm:$0xff]
        %v1740 = vld [vmem:[#allocation2 + $0x38] sm:$0xff]
        %v1741 = vpack.c.bf16 %v1676, %v1675
        %v1742 = vpack.c.bf16 %v1678, %v1677
        %v1743 = vpack.c.bf16 %v1680, %v1679
        %v1744 = vpack.c.bf16 %v1682, %v1681
        %v1745 = vpack.c.bf16 %v1684, %v1683
        %v1746 = vpack.c.bf16 %v1686, %v1685
        %v1747 = vpack.c.bf16 %v1688, %v1687
        %v1748 = vpack.c.bf16 %v1690, %v1689
        %1749 = vmatprep.subr.bf16.mxu0 0
        %1750 = vmatpush1.bf16.msra.mxu0 %v1748
        %1751 = vmatprep.subr.bf16.mxu0 0
        %1752 = vmatpush1.bf16.msra.mxu0 %v1747
        %1753 = vmatprep.subr.bf16.mxu0 0
        %1754 = vmatpush1.bf16.msra.mxu0 %v1746
        %1755 = vmatprep.subr.bf16.mxu0 0
        %1756 = vmatpush1.bf16.msra.mxu0 %v1745
        %1757 = vmatprep.subr.bf16.mxu0 0
        %1758 = vmatpush1.bf16.msra.mxu0 %v1744
        %1759 = vmatprep.subr.bf16.mxu0 0
        %1760 = vmatpush1.bf16.msra.mxu0 %v1743
        %1761 = vmatprep.subr.bf16.mxu0 0
        %1762 = vmatpush1.bf16.msra.mxu0 %v1742
        %1763 = vmatprep.subr.bf16.mxu0 0
        %1764 = vmatpush1.bf16.msra.mxu0 %v1741
        %1765 = vmatprep.subr.bf16.mxu0 0
        %1766 = vmatpush2.bf16.msra.mxu0 0
        %1767 = vmatprep.subr.bf16.mxu0 0
        %1768 = vmatpush2.bf16.msra.mxu0 0
        %1769 = vmatprep.subr.bf16.mxu0 0
        %1770 = vmatpush2.bf16.msra.mxu0 0
        %1771 = vmatprep.subr.bf16.mxu0 0
        %1772 = vmatpush2.bf16.msra.mxu0 0
        %1773 = vmatprep.subr.bf16.mxu0 0
        %1774 = vmatpush2.bf16.msra.mxu0 0
        %1775 = vmatprep.subr.bf16.mxu0 0
        %1776 = vmatpush2.bf16.msra.mxu0 0
        %1777 = vmatprep.subr.bf16.mxu0 0
        %1778 = vmatpush2.bf16.msra.mxu0 0
        %1779 = vmatprep.subr.bf16.mxu0 0
        %1780 = vmatpush2.bf16.msra.mxu0 0
        %1781 = vmatprep.mubr.bf16.mxu0 0
        %1782 = vmatmul.mubr.bf16.gmra.mxu0 %v1729
        %v1783 = vpop.f32.mrf.mxu0
        %v1784 = vadd.f32 0.0, %v1783
        %v1785 = vpop.f32.mrf.mxu0
        %v1786 = vpop.f32.mrf.mxu0
        %v1787 = vadd.f32 0.0, %v1786
        %v1788 = vpop.f32.mrf.mxu0
        %1789 = vmatprep.mubr.bf16.mxu0 0
        %1790 = vmatmul.mubr.bf16.gmra.mxu0 %v1730
        %v1791 = vpop.f32.mrf.mxu0
        %v1792 = vadd.f32 0.0, %v1791
        %v1793 = vpop.f32.mrf.mxu0
        %v1794 = vpop.f32.mrf.mxu0
        %v1795 = vadd.f32 0.0, %v1794
        %v1796 = vpop.f32.mrf.mxu0
        %1797 = vmatprep.mubr.bf16.mxu0 0
        %1798 = vmatmul.mubr.bf16.gmra.mxu0 %v1731
        %v1799 = vpop.f32.mrf.mxu0
        %v1800 = vadd.f32 0.0, %v1799
        %v1801 = vpop.f32.mrf.mxu0
        %v1802 = vpop.f32.mrf.mxu0
        %v1803 = vadd.f32 0.0, %v1802
        %v1804 = vpop.f32.mrf.mxu0
        %1805 = vmatprep.mubr.bf16.mxu0 0
        %1806 = vmatmul.mubr.bf16.gmra.mxu0 %v1732
        %v1807 = vpop.f32.mrf.mxu0
        %v1808 = vadd.f32 0.0, %v1807
        %v1809 = vpop.f32.mrf.mxu0
        %v1810 = vpop.f32.mrf.mxu0
        %v1811 = vadd.f32 0.0, %v1810
        %v1812 = vpop.f32.mrf.mxu0
        %1813 = vdwg.mxu0
        %v1814 = vadd.f32 %v1733, %v1784
        %v1815 = vadd.f32 %v1734, %v1787
        %v1816 = vadd.f32 %v1735, %v1792
        %v1817 = vadd.f32 %v1736, %v1795
        %v1818 = vadd.f32 %v1737, %v1800
        %v1819 = vadd.f32 %v1738, %v1803
        %v1820 = vadd.f32 %v1739, %v1808
        %v1821 = vadd.f32 %v1740, %v1811
        %1822 = vst [vmem:[#allocation2] sm:$0xff] %v1814
        %1823 = vst [vmem:[#allocation2 + $0x8] sm:$0xff] %v1815
        %1824 = vst [vmem:[#allocation2 + $0x10] sm:$0xff] %v1816
        %1825 = vst [vmem:[#allocation2 + $0x18] sm:$0xff] %v1817
        %1826 = vst [vmem:[#allocation2 + $0x20] sm:$0xff] %v1818
        %1827 = vst [vmem:[#allocation2 + $0x28] sm:$0xff] %v1819
        %1828 = vst [vmem:[#allocation2 + $0x30] sm:$0xff] %v1820
        %1829 = vst [vmem:[#allocation2 + $0x38] sm:$0xff] %v1821
        %p1830 = scmp.eq.s32.totalorder %s32, 2
        // Predicated region
        $region117: #{tpu_custom_call.1} parent=83 // pred_check
          %p1831 = pneg %p1830
        $region118: #{tpu_custom_call.1} parent=83 // pred_check_branch
          %1833 = sbr.rel (%p1831) target = $region120
        $region119: #{tpu_custom_call.1} parent=83 // pred_region
          %v1834 = vld [vmem:[#allocation3] sm:$0xf]
          %v1835 = vld [vmem:[#allocation3 + $0x4] sm:$0xf]
          %v1836 = vld [vmem:[#allocation3 + $0x8] sm:$0xf]
          %v1837 = vld [vmem:[#allocation3 + $0xc] sm:$0xf]
          %v1838 = vld [vmem:[#allocation3 + $0x10] sm:$0xf]
          %v1839 = vld [vmem:[#allocation3 + $0x14] sm:$0xf]
          %v1840 = vld [vmem:[#allocation3 + $0x18] sm:$0xf]
          %v1841 = vld [vmem:[#allocation3 + $0x1c] sm:$0xf]
          %v1842 = vld [vmem:[#allocation11] sm:$0xf]
          %v1843 = vld [vmem:[#allocation11 + $0x4] sm:$0xf]
          %v1844 = vld [vmem:[#allocation11 + $0x8] sm:$0xf]
          %v1845 = vld [vmem:[#allocation11 + $0xc] sm:$0xf]
          %v1846 = vld [vmem:[#allocation11 + $0x10] sm:$0xf]
          %v1847 = vld [vmem:[#allocation11 + $0x14] sm:$0xf]
          %v1848 = vld [vmem:[#allocation11 + $0x18] sm:$0xf]
          %v1849 = vld [vmem:[#allocation11 + $0x1c] sm:$0xf]
          %v1850 = vld [vmem:[#allocation11 + $0x20] sm:$0xf]
          %v1851 = vld [vmem:[#allocation11 + $0x24] sm:$0xf]
          %v1852 = vld [vmem:[#allocation11 + $0x28] sm:$0xf]
          %v1853 = vld [vmem:[#allocation11 + $0x2c] sm:$0xf]
          %v1854 = vld [vmem:[#allocation11 + $0x30] sm:$0xf]
          %v1855 = vld [vmem:[#allocation11 + $0x34] sm:$0xf]
          %v1856 = vld [vmem:[#allocation11 + $0x38] sm:$0xf]
          %v1857 = vld [vmem:[#allocation11 + $0x3c] sm:$0xf]
          %v1858 = vld [vmem:[#allocation2] sm:$0xff]
          %v1859 = vld [vmem:[#allocation2 + $0x8] sm:$0xff]
          %v1860 = vld [vmem:[#allocation2 + $0x10] sm:$0xff]
          %v1861 = vld [vmem:[#allocation2 + $0x18] sm:$0xff]
          %v1862 = vld [vmem:[#allocation2 + $0x20] sm:$0xff]
          %v1863 = vld [vmem:[#allocation2 + $0x28] sm:$0xff]
          %v1864 = vld [vmem:[#allocation2 + $0x30] sm:$0xff]
          %v1865 = vld [vmem:[#allocation2 + $0x38] sm:$0xff]
          %v1866 = vpack.c.bf16 %v1859, %v1858
          %v1867 = vpack.c.bf16 %v1861, %v1860
          %v1868 = vpack.c.bf16 %v1863, %v1862
          %v1869 = vpack.c.bf16 %v1865, %v1864
          %v1870 = vld [vmem:[#allocation12] sm:$0xf]
          %v1871 = vld [vmem:[#allocation12 + $0x4] sm:$0xf]
          %v1872 = vld [vmem:[#allocation12 + $0x8] sm:$0xf]
          %v1873 = vld [vmem:[#allocation12 + $0xc] sm:$0xf]
          %v1874 = vld [vmem:[#allocation12 + $0x10] sm:$0xf]
          %v1875 = vld [vmem:[#allocation12 + $0x14] sm:$0xf]
          %v1876 = vld [vmem:[#allocation12 + $0x18] sm:$0xf]
          %v1877 = vld [vmem:[#allocation12 + $0x1c] sm:$0xf]
          %v1878 = vld [vmem:[#allocation12 + $0x20] sm:$0xf]
          %v1879 = vld [vmem:[#allocation12 + $0x24] sm:$0xf]
          %v1880 = vld [vmem:[#allocation12 + $0x28] sm:$0xf]
          %v1881 = vld [vmem:[#allocation12 + $0x2c] sm:$0xf]
          %v1882 = vld [vmem:[#allocation12 + $0x30] sm:$0xf]
          %v1883 = vld [vmem:[#allocation12 + $0x34] sm:$0xf]
          %v1884 = vld [vmem:[#allocation12 + $0x38] sm:$0xf]
          %v1885 = vld [vmem:[#allocation12 + $0x3c] sm:$0xf]
          %v1902 = vunpack.c.l.b16 %v1870
          %v1903 = vunpack.c.l.b16 %v1871
          %v1904 = vunpack.c.l.b16 %v1872
          %v1905 = vunpack.c.l.b16 %v1873
          %v1906 = vunpack.c.l.b16 %v1874
          %v1907 = vunpack.c.l.b16 %v1875
          %v1908 = vunpack.c.l.b16 %v1876
          %v1909 = vunpack.c.l.b16 %v1877
          %v1910 = vunpack.c.l.b16 %v1878
          %v1911 = vunpack.c.l.b16 %v1879
          %v1912 = vunpack.c.l.b16 %v1880
          %v1913 = vunpack.c.l.b16 %v1881
          %v1914 = vunpack.c.l.b16 %v1882
          %v1915 = vunpack.c.l.b16 %v1883
          %v1916 = vunpack.c.l.b16 %v1884
          %v1917 = vunpack.c.l.b16 %v1885
          %v1918 = vpack.c.b16 %v1903, %v1902
          %v1919 = vpack.c.b16 %v1905, %v1904
          %v1920 = vpack.c.b16 %v1907, %v1906
          %v1921 = vpack.c.b16 %v1909, %v1908
          %v1922 = vpack.c.b16 %v1911, %v1910
          %v1923 = vpack.c.b16 %v1913, %v1912
          %v1924 = vpack.c.b16 %v1915, %v1914
          %v1925 = vpack.c.b16 %v1917, %v1916
          %1934 = vmatprep.subr.bf16.mxu0 0
          %1935 = vmatpush1.bf16.msra.mxu0 %v1925
          %1936 = vmatprep.subr.bf16.mxu0 0
          %1937 = vmatpush1.bf16.msra.mxu0 %v1924
          %1938 = vmatprep.subr.bf16.mxu0 0
          %1939 = vmatpush1.bf16.msra.mxu0 %v1923
          %1940 = vmatprep.subr.bf16.mxu0 0
          %1941 = vmatpush1.bf16.msra.mxu0 %v1922
          %1942 = vmatprep.subr.bf16.mxu0 0
          %1943 = vmatpush1.bf16.msra.mxu0 %v1921
          %1944 = vmatprep.subr.bf16.mxu0 0
          %1945 = vmatpush1.bf16.msra.mxu0 %v1920
          %1946 = vmatprep.subr.bf16.mxu0 0
          %1947 = vmatpush1.bf16.msra.mxu0 %v1919
          %1948 = vmatprep.subr.bf16.mxu0 0
          %1949 = vmatpush1.bf16.msra.mxu0 %v1918
          %1950 = vmatprep.subr.bf16.mxu0 0
          %1951 = vmatpush2.bf16.msra.mxu0 0
          %1952 = vmatprep.subr.bf16.mxu0 0
          %1953 = vmatpush2.bf16.msra.mxu0 0
          %1954 = vmatprep.subr.bf16.mxu0 0
          %1955 = vmatpush2.bf16.msra.mxu0 0
          %1956 = vmatprep.subr.bf16.mxu0 0
          %1957 = vmatpush2.bf16.msra.mxu0 0
          %1958 = vmatprep.subr.bf16.mxu0 0
          %1959 = vmatpush2.bf16.msra.mxu0 0
          %1960 = vmatprep.subr.bf16.mxu0 0
          %1961 = vmatpush2.bf16.msra.mxu0 0
          %1962 = vmatprep.subr.bf16.mxu0 0
          %1963 = vmatpush2.bf16.msra.mxu0 0
          %1964 = vmatprep.subr.bf16.mxu0 0
          %1965 = vmatpush2.bf16.msra.mxu0 0
          %1966 = vmatprep.mubr.bf16.mxu0 0
          %1967 = vmatmul.mubr.bf16.gmra.mxu0 %v1866
          %v1968 = vpop.f32.mrf.mxu0
          %v1969 = vadd.f32 0.0, %v1968
          %v1970 = vpop.f32.mrf.mxu0
          %v1971 = vpop.f32.mrf.mxu0
          %v1972 = vadd.f32 0.0, %v1971
          %v1973 = vpop.f32.mrf.mxu0
          %1974 = vmatprep.mubr.bf16.mxu0 0
          %1975 = vmatmul.mubr.bf16.gmra.mxu0 %v1867
          %v1976 = vpop.f32.mrf.mxu0
          %v1977 = vadd.f32 0.0, %v1976
          %v1978 = vpop.f32.mrf.mxu0
          %v1979 = vpop.f32.mrf.mxu0
          %v1980 = vadd.f32 0.0, %v1979
          %v1981 = vpop.f32.mrf.mxu0
          %1982 = vmatprep.mubr.bf16.mxu0 0
          %1983 = vmatmul.mubr.bf16.gmra.mxu0 %v1868
          %v1984 = vpop.f32.mrf.mxu0
          %v1985 = vadd.f32 0.0, %v1984
          %v1986 = vpop.f32.mrf.mxu0
          %v1987 = vpop.f32.mrf.mxu0
          %v1988 = vadd.f32 0.0, %v1987
          %v1989 = vpop.f32.mrf.mxu0
          %1990 = vmatprep.mubr.bf16.mxu0 0
          %1991 = vmatmul.mubr.bf16.gmra.mxu0 %v1869
          %v1992 = vpop.f32.mrf.mxu0
          %v1993 = vadd.f32 0.0, %v1992
          %v1994 = vpop.f32.mrf.mxu0
          %v1995 = vpop.f32.mrf.mxu0
          %v1996 = vadd.f32 0.0, %v1995
          %v1997 = vpop.f32.mrf.mxu0
          %1998 = vdwg.mxu0
          %v2007 = vunpack.c.l.b16 %v1834
          %v2008 = vunpack.c.l.b16 %v1835
          %v2009 = vunpack.c.l.b16 %v1836
          %v2010 = vunpack.c.l.b16 %v1837
          %v2011 = vunpack.c.l.b16 %v1838
          %v2012 = vunpack.c.l.b16 %v1839
          %v2013 = vunpack.c.l.b16 %v1840
          %v2014 = vunpack.c.l.b16 %v1841
          %v2015 = vpack.c.b16 %v2008, %v2007
          %v2016 = vpack.c.b16 %v2010, %v2009
          %v2017 = vpack.c.b16 %v2012, %v2011
          %v2018 = vpack.c.b16 %v2014, %v2013
          %v2039 = vunpack.c.l.b16 %v1842
          %v2040 = vunpack.c.l.b16 %v1843
          %v2041 = vunpack.c.l.b16 %v1844
          %v2042 = vunpack.c.l.b16 %v1845
          %v2043 = vunpack.c.l.b16 %v1846
          %v2044 = vunpack.c.l.b16 %v1847
          %v2045 = vunpack.c.l.b16 %v1848
          %v2046 = vunpack.c.l.b16 %v1849
          %v2047 = vunpack.c.l.b16 %v1850
          %v2048 = vunpack.c.l.b16 %v1851
          %v2049 = vunpack.c.l.b16 %v1852
          %v2050 = vunpack.c.l.b16 %v1853
          %v2051 = vunpack.c.l.b16 %v1854
          %v2052 = vunpack.c.l.b16 %v1855
          %v2053 = vunpack.c.l.b16 %v1856
          %v2054 = vunpack.c.l.b16 %v1857
          %v2055 = vpack.c.b16 %v2040, %v2039
          %v2056 = vpack.c.b16 %v2042, %v2041
          %v2057 = vpack.c.b16 %v2044, %v2043
          %v2058 = vpack.c.b16 %v2046, %v2045
          %v2059 = vpack.c.b16 %v2048, %v2047
          %v2060 = vpack.c.b16 %v2050, %v2049
          %v2061 = vpack.c.b16 %v2052, %v2051
          %v2062 = vpack.c.b16 %v2054, %v2053
          %2071 = vmatprep.subr.bf16.mxu0 0
          %2072 = vmatpush1.bf16.msra.mxu0 %v2062
          %2073 = vmatprep.subr.bf16.mxu0 0
          %2074 = vmatpush1.bf16.msra.mxu0 %v2061
          %2075 = vmatprep.subr.bf16.mxu0 0
          %2076 = vmatpush1.bf16.msra.mxu0 %v2060
          %2077 = vmatprep.subr.bf16.mxu0 0
          %2078 = vmatpush1.bf16.msra.mxu0 %v2059
          %2079 = vmatprep.subr.bf16.mxu0 0
          %2080 = vmatpush1.bf16.msra.mxu0 %v2058
          %2081 = vmatprep.subr.bf16.mxu0 0
          %2082 = vmatpush1.bf16.msra.mxu0 %v2057
          %2083 = vmatprep.subr.bf16.mxu0 0
          %2084 = vmatpush1.bf16.msra.mxu0 %v2056
          %2085 = vmatprep.subr.bf16.mxu0 0
          %2086 = vmatpush1.bf16.msra.mxu0 %v2055
          %2087 = vmatprep.subr.bf16.mxu0 0
          %2088 = vmatpush2.bf16.msra.mxu0 0
          %2089 = vmatprep.subr.bf16.mxu0 0
          %2090 = vmatpush2.bf16.msra.mxu0 0
          %2091 = vmatprep.subr.bf16.mxu0 0
          %2092 = vmatpush2.bf16.msra.mxu0 0
          %2093 = vmatprep.subr.bf16.mxu0 0
          %2094 = vmatpush2.bf16.msra.mxu0 0
          %2095 = vmatprep.subr.bf16.mxu0 0
          %2096 = vmatpush2.bf16.msra.mxu0 0
          %2097 = vmatprep.subr.bf16.mxu0 0
          %2098 = vmatpush2.bf16.msra.mxu0 0
          %2099 = vmatprep.subr.bf16.mxu0 0
          %2100 = vmatpush2.bf16.msra.mxu0 0
          %2101 = vmatprep.subr.bf16.mxu0 0
          %2102 = vmatpush2.bf16.msra.mxu0 0
          %2103 = vmatprep.mubr.bf16.mxu0 0
          %2104 = vmatmul.mubr.bf16.gmra.mxu0 %v2015
          %v2105 = vpop.f32.mrf.mxu0
          %v2106 = vadd.f32 %v1969, %v2105
          %v2107 = vpop.f32.mrf.mxu0
          %v2108 = vpop.f32.mrf.mxu0
          %v2109 = vadd.f32 %v1972, %v2108
          %v2110 = vpop.f32.mrf.mxu0
          %2111 = vmatprep.mubr.bf16.mxu0 0
          %2112 = vmatmul.mubr.bf16.gmra.mxu0 %v2016
          %v2113 = vpop.f32.mrf.mxu0
          %v2114 = vadd.f32 %v1977, %v2113
          %v2115 = vpop.f32.mrf.mxu0
          %v2116 = vpop.f32.mrf.mxu0
          %v2117 = vadd.f32 %v1980, %v2116
          %v2118 = vpop.f32.mrf.mxu0
          %2119 = vmatprep.mubr.bf16.mxu0 0
          %2120 = vmatmul.mubr.bf16.gmra.mxu0 %v2017
          %v2121 = vpop.f32.mrf.mxu0
          %v2122 = vadd.f32 %v1985, %v2121
          %v2123 = vpop.f32.mrf.mxu0
          %v2124 = vpop.f32.mrf.mxu0
          %v2125 = vadd.f32 %v1988, %v2124
          %v2126 = vpop.f32.mrf.mxu0
          %2127 = vmatprep.mubr.bf16.mxu0 0
          %2128 = vmatmul.mubr.bf16.gmra.mxu0 %v2018
          %v2129 = vpop.f32.mrf.mxu0
          %v2130 = vadd.f32 %v1993, %v2129
          %v2131 = vpop.f32.mrf.mxu0
          %v2132 = vpop.f32.mrf.mxu0
          %v2133 = vadd.f32 %v1996, %v2132
          %v2134 = vpop.f32.mrf.mxu0
          %2135 = vdwg.mxu0
          %v2136 = vld [vmem:[%s13] sm:$0x1]
          %v2138 = vlaneseq
          %v2139 = vshrl.u32 %v2138, 7
          %v2140 = vsub.s32 0, %v2139
          %v2141 = vrot.slane %v2136, %v2140
          %v2143 = vadd.f32 %v2106, %v2141
          %v2144 = vadd.f32 %v2109, %v2141
          %v2145 = vadd.f32 %v2114, %v2141
          %v2146 = vadd.f32 %v2117, %v2141
          %v2147 = vadd.f32 %v2122, %v2141
          %v2148 = vadd.f32 %v2125, %v2141
          %v2149 = vadd.f32 %v2130, %v2141
          %v2150 = vadd.f32 %v2133, %v2141
          %v2151 = vxor.u32 %v2143, 2147483648
          %v2152 = vxor.u32 %v2144, 2147483648
          %v2153 = vxor.u32 %v2145, 2147483648
          %v2154 = vxor.u32 %v2146, 2147483648
          %v2155 = vxor.u32 %v2147, 2147483648
          %v2156 = vxor.u32 %v2148, 2147483648
          %v2157 = vxor.u32 %v2149, 2147483648
          %v2158 = vxor.u32 %v2150, 2147483648
          %v2159 = vmul.f32 %v2151, 1.442695
          %v2160 = vpow.pop %v2159
          %v2161 = vmul.f32 %v2152, 1.442695
          %v2162 = vpow.pop %v2161
          %v2163 = vmul.f32 %v2153, 1.442695
          %v2164 = vpow.pop %v2163
          %v2165 = vmul.f32 %v2154, 1.442695
          %v2166 = vpow.pop %v2165
          %v2167 = vmul.f32 %v2155, 1.442695
          %v2168 = vpow.pop %v2167
          %v2169 = vmul.f32 %v2156, 1.442695
          %v2170 = vpow.pop %v2169
          %v2171 = vmul.f32 %v2157, 1.442695
          %v2172 = vpow.pop %v2171
          %v2173 = vmul.f32 %v2158, 1.442695
          %v2174 = vpow.pop %v2173
          %v2175 = vadd.f32 %v2160, 1.0
          %v2176 = vadd.f32 %v2162, 1.0
          %v2177 = vadd.f32 %v2164, 1.0
          %v2178 = vadd.f32 %v2166, 1.0
          %v2179 = vadd.f32 %v2168, 1.0
          %v2180 = vadd.f32 %v2170, 1.0
          %v2181 = vadd.f32 %v2172, 1.0
          %v2182 = vadd.f32 %v2174, 1.0
          %v2183 = vrcp.pop %v2175
          %v2184 = vmul.f32 1.0, %v2183
          %v2185 = vrcp.pop %v2176
          %v2186 = vmul.f32 1.0, %v2185
          %v2187 = vrcp.pop %v2177
          %v2188 = vmul.f32 1.0, %v2187
          %v2189 = vrcp.pop %v2178
          %v2190 = vmul.f32 1.0, %v2189
          %v2191 = vrcp.pop %v2179
          %v2192 = vmul.f32 1.0, %v2191
          %v2193 = vrcp.pop %v2180
          %v2194 = vmul.f32 1.0, %v2193
          %v2195 = vrcp.pop %v2181
          %v2196 = vmul.f32 1.0, %v2195
          %v2197 = vrcp.pop %v2182
          %v2198 = vmul.f32 1.0, %v2197
          %v2199 = vmul.f32 %v2143, %v2184
          %v2200 = vmul.f32 %v2144, %v2186
          %v2201 = vmul.f32 %v2145, %v2188
          %v2202 = vmul.f32 %v2146, %v2190
          %v2203 = vmul.f32 %v2147, %v2192
          %v2204 = vmul.f32 %v2148, %v2194
          %v2205 = vmul.f32 %v2149, %v2196
          %v2206 = vmul.f32 %v2150, %v2198
          %v2207 = vpack.c.bf16 %v2200, %v2199
          %v2208 = vpack.c.bf16 %v2202, %v2201
          %v2209 = vpack.c.bf16 %v2204, %v2203
          %v2210 = vpack.c.bf16 %v2206, %v2205
          %v2211 = vld [vmem:[#allocation14] sm:$0xf]
          %v2212 = vld [vmem:[#allocation14 + $0x4] sm:$0xf]
          %v2213 = vld [vmem:[#allocation14 + $0x8] sm:$0xf]
          %v2214 = vld [vmem:[#allocation14 + $0xc] sm:$0xf]
          %v2215 = vld [vmem:[#allocation14 + $0x10] sm:$0xf]
          %v2216 = vld [vmem:[#allocation14 + $0x14] sm:$0xf]
          %v2217 = vld [vmem:[#allocation14 + $0x18] sm:$0xf]
          %v2218 = vld [vmem:[#allocation14 + $0x1c] sm:$0xf]
          %v2219 = vld [vmem:[#allocation14 + $0x20] sm:$0xf]
          %v2220 = vld [vmem:[#allocation14 + $0x24] sm:$0xf]
          %v2221 = vld [vmem:[#allocation14 + $0x28] sm:$0xf]
          %v2222 = vld [vmem:[#allocation14 + $0x2c] sm:$0xf]
          %v2223 = vld [vmem:[#allocation14 + $0x30] sm:$0xf]
          %v2224 = vld [vmem:[#allocation14 + $0x34] sm:$0xf]
          %v2225 = vld [vmem:[#allocation14 + $0x38] sm:$0xf]
          %v2226 = vld [vmem:[#allocation14 + $0x3c] sm:$0xf]
          %v2227 = vld [vmem:[%s15] sm:$0x1]
          %v2229 = vlaneseq
          %v2230 = vshrl.u32 %v2229, 7
          %v2231 = vsub.s32 0, %v2230
          %v2232 = vrot.slane %v2227, %v2231
          %v2250 = vunpack.c.l.b16 %v2211
          %v2251 = vunpack.c.l.b16 %v2212
          %v2252 = vunpack.c.l.b16 %v2213
          %v2253 = vunpack.c.l.b16 %v2214
          %v2254 = vunpack.c.l.b16 %v2215
          %v2255 = vunpack.c.l.b16 %v2216
          %v2256 = vunpack.c.l.b16 %v2217
          %v2257 = vunpack.c.l.b16 %v2218
          %v2258 = vunpack.c.l.b16 %v2219
          %v2259 = vunpack.c.l.b16 %v2220
          %v2260 = vunpack.c.l.b16 %v2221
          %v2261 = vunpack.c.l.b16 %v2222
          %v2262 = vunpack.c.l.b16 %v2223
          %v2263 = vunpack.c.l.b16 %v2224
          %v2264 = vunpack.c.l.b16 %v2225
          %v2265 = vunpack.c.l.b16 %v2226
          %v2266 = vpack.c.b16 %v2251, %v2250
          %v2267 = vpack.c.b16 %v2253, %v2252
          %v2268 = vpack.c.b16 %v2255, %v2254
          %v2269 = vpack.c.b16 %v2257, %v2256
          %v2270 = vpack.c.b16 %v2259, %v2258
          %v2271 = vpack.c.b16 %v2261, %v2260
          %v2272 = vpack.c.b16 %v2263, %v2262
          %v2273 = vpack.c.b16 %v2265, %v2264
          %2282 = vmatprep.subr.bf16.mxu0 0
          %2283 = vmatpush1.bf16.msra.mxu0 %v2273
          %2284 = vmatprep.subr.bf16.mxu0 0
          %2285 = vmatpush1.bf16.msra.mxu0 %v2272
          %2286 = vmatprep.subr.bf16.mxu0 0
          %2287 = vmatpush1.bf16.msra.mxu0 %v2271
          %2288 = vmatprep.subr.bf16.mxu0 0
          %2289 = vmatpush1.bf16.msra.mxu0 %v2270
          %2290 = vmatprep.subr.bf16.mxu0 0
          %2291 = vmatpush1.bf16.msra.mxu0 %v2269
          %2292 = vmatprep.subr.bf16.mxu0 0
          %2293 = vmatpush1.bf16.msra.mxu0 %v2268
          %2294 = vmatprep.subr.bf16.mxu0 0
          %2295 = vmatpush1.bf16.msra.mxu0 %v2267
          %2296 = vmatprep.subr.bf16.mxu0 0
          %2297 = vmatpush1.bf16.msra.mxu0 %v2266
          %2298 = vmatprep.subr.bf16.mxu0 0
          %2299 = vmatpush2.bf16.msra.mxu0 0
          %2300 = vmatprep.subr.bf16.mxu0 0
          %2301 = vmatpush2.bf16.msra.mxu0 0
          %2302 = vmatprep.subr.bf16.mxu0 0
          %2303 = vmatpush2.bf16.msra.mxu0 0
          %2304 = vmatprep.subr.bf16.mxu0 0
          %2305 = vmatpush2.bf16.msra.mxu0 0
          %2306 = vmatprep.subr.bf16.mxu0 0
          %2307 = vmatpush2.bf16.msra.mxu0 0
          %2308 = vmatprep.subr.bf16.mxu0 0
          %2309 = vmatpush2.bf16.msra.mxu0 0
          %2310 = vmatprep.subr.bf16.mxu0 0
          %2311 = vmatpush2.bf16.msra.mxu0 0
          %2312 = vmatprep.subr.bf16.mxu0 0
          %2313 = vmatpush2.bf16.msra.mxu0 0
          %2314 = vmatprep.mubr.bf16.mxu0 0
          %2315 = vmatmul.mubr.bf16.gmra.mxu0 %v2207
          %v2316 = vpop.f32.mrf.mxu0
          %v2317 = vadd.f32 %v2232, %v2316
          %v2318 = vpop.f32.mrf.mxu0
          %v2319 = vpop.f32.mrf.mxu0
          %v2320 = vadd.f32 %v2232, %v2319
          %v2321 = vpop.f32.mrf.mxu0
          %2322 = vmatprep.mubr.bf16.mxu0 0
          %2323 = vmatmul.mubr.bf16.gmra.mxu0 %v2208
          %v2324 = vpop.f32.mrf.mxu0
          %v2325 = vadd.f32 %v2232, %v2324
          %v2326 = vpop.f32.mrf.mxu0
          %v2327 = vpop.f32.mrf.mxu0
          %v2328 = vadd.f32 %v2232, %v2327
          %v2329 = vpop.f32.mrf.mxu0
          %2330 = vmatprep.mubr.bf16.mxu0 0
          %2331 = vmatmul.mubr.bf16.gmra.mxu0 %v2209
          %v2332 = vpop.f32.mrf.mxu0
          %v2333 = vadd.f32 %v2232, %v2332
          %v2334 = vpop.f32.mrf.mxu0
          %v2335 = vpop.f32.mrf.mxu0
          %v2336 = vadd.f32 %v2232, %v2335
          %v2337 = vpop.f32.mrf.mxu0
          %2338 = vmatprep.mubr.bf16.mxu0 0
          %2339 = vmatmul.mubr.bf16.gmra.mxu0 %v2210
          %v2340 = vpop.f32.mrf.mxu0
          %v2341 = vadd.f32 %v2232, %v2340
          %v2342 = vpop.f32.mrf.mxu0
          %v2343 = vpop.f32.mrf.mxu0
          %v2344 = vadd.f32 %v2232, %v2343
          %v2345 = vpop.f32.mrf.mxu0
          %2346 = vdwg.mxu0
          %2347 = vst [vmem:[#allocation15] sm:$0xff] %v2317
          %2348 = vst [vmem:[#allocation15 + $0x8] sm:$0xff] %v2320
          %2349 = vst [vmem:[#allocation15 + $0x10] sm:$0xff] %v2325
          %2350 = vst [vmem:[#allocation15 + $0x18] sm:$0xff] %v2328
          %2351 = vst [vmem:[#allocation15 + $0x20] sm:$0xff] %v2333
          %2352 = vst [vmem:[#allocation15 + $0x28] sm:$0xff] %v2336
          %2353 = vst [vmem:[#allocation15 + $0x30] sm:$0xff] %v2341
          %2354 = vst [vmem:[#allocation15 + $0x38] sm:$0xff] %v2344
        $region120: #{tpu_custom_call.1} parent=83 // pred_fallthru
          _
        // Predicated region
        $region121: #{tpu_custom_call.1} parent=83 // pred_check
          %p2355 = pneg %p401
        $region122: #{tpu_custom_call.1} parent=83 // pred_check_branch
          %2357 = sbr.rel (%p2355) target = $region124
        $region123: #{tpu_custom_call.1} parent=83 // pred_region
          %s2359 = ssub.s32 1024, 1024
          %2360 = vsyncadd [#allocation5], %s2359
          %s2361 = sshll.u32 [#allocation15], 4
          %s2362 = int_to_ptr.vmem [resolvable:$true] %s2361
          %2367 = dma.vmem_to_hbm [thread:$0]  %s2362, 1024, %s16, [#allocation5], 128, 128, 8
        $region124: #{tpu_custom_call.1} parent=83 // pred_fallthru
          _
        // Predicated region
        $region125: #{tpu_custom_call.1} parent=83 // pred_check
          %p2368 = pneg %p401
        $region126: #{tpu_custom_call.1} parent=83 // pred_check_branch
          %2370 = sbr.rel (%p2368) target = $region128
        $region127: #{tpu_custom_call.1} parent=83 // pred_region
          %2371 = dma.done [#allocation5], 1024
        $region128: #{tpu_custom_call.1} parent=83 // pred_fallthru
          _
      $region84: #{tpu_custom_call.1} parent=5 // pred_fallthru
        _
      %p2372 = scmp.le.s32.totalorder 2, %s27
      // Predicated region
      $region129: #{tpu_custom_call.1} parent=5 // pred_check
        %p2373 = pneg %p2372
      $region130: #{tpu_custom_call.1} parent=5 // pred_check_branch
        %2375 = sbr.rel (%p2373) target = $region132
      $region131: #{tpu_custom_call.1} parent=5 // pred_region
        %s2376 = ssub.s32 %s27, 2
      $region132: #{tpu_custom_call.1} parent=5 // pred_fallthru
        _
    $region6: #{tpu_custom_call.1} parent=1 // loop_footer
      %s31 = sadd.s32 1, %s27
    $region7: #{tpu_custom_call.1} parent=1 // loop_footer_branch
      %26 = sbr.rel target = $region3
    $region8: #{tpu_custom_call.1} parent=1 // loop_exit
      _
    %2377 = vsyncpa [#allocation4], 1
    %s2378 = scalar_lea.sflag [#allocation4], 1
    %2379 = vsyncpa %s2378, 1
    %2380 = vsyncpa [#allocation7], 1
    %2381 = vsyncpa [#allocation10], 1
    %2382 = vsyncpa [#allocation13], 1
    %2383 = vsyncpa [#allocation5], 1
    %s2384 = scalar_lea.sflag [#allocation5], 1
    %2385 = vsyncpa %s2384, 1

</llo_original>
